<compile_context>
chip_gen: v5e
topology: v5e:2x2
jax: 0.10.0
libtpu: 0.0.40
codegen_flags: <defaults>
</compile_context>

<pallas_src>
import functools

import jax
import jax.numpy as jnp
from jax.experimental import pallas as pl
from jax.experimental.pallas import tpu as pltpu


def _fused_attention_kernel(
        x_ref, ctx_ref,
        wq_ref, bq_ref, wk_ref, bk_ref, wv_ref, bv_ref,
        wo_ref, bo_ref, gamma_ref, beta_ref,
        o_ref,
        q_scr, m_scr, l_scr, acc_scr,
        *, heads, dim_head, eps):
    """Fused LayerNorm + flat QKV projections + online-softmax attention + out-proj
    + residual.  Grid = (batch, q_tile, kv_tile); kv is the innermost (arbitrary)
    axis and carries m/l/acc scratch."""
    kv = pl.program_id(2)
    n_kv = pl.num_programs(2)
    f32, bf16 = jnp.float32, jnp.bfloat16

    # ---- phase 1 (once per (batch, q-tile)): LayerNorm + flat Q projection ----
    @pl.when(kv == 0)
    def _():
        x = x_ref[0].astype(f32)                                 # (tq, Dq)
        mu = jnp.mean(x, axis=-1, keepdims=True)
        var = jnp.mean((x - mu) * (x - mu), axis=-1, keepdims=True)
        xn = (x - mu) * jax.lax.rsqrt(var + eps)
        xn = xn * gamma_ref[...] + beta_ref[...]
        # One lane-dense (tq, Dq) @ (Dq, Dq) matmul; softmax scale already folded
        # into wq / bq by the wrapper.
        q = jnp.dot(xn.astype(bf16), wq_ref[...],
                    preferred_element_type=f32) + bq_ref[...]
        q_scr[...] = q.astype(bf16)
        m_scr[...] = jnp.full_like(m_scr, -jnp.inf)
        l_scr[...] = jnp.zeros_like(l_scr)
        acc_scr[...] = jnp.zeros_like(acc_scr)

    # ---- phase 2 (every kv tile): flat K/V projections + online softmax ----
    ctx = ctx_ref[0].astype(bf16)                                # (tkv, Dc)
    k = jnp.dot(ctx, wk_ref[...], preferred_element_type=f32) + bk_ref[...]
    v = jnp.dot(ctx, wv_ref[...], preferred_element_type=f32) + bv_ref[...]
    k = k.astype(bf16)                                           # (tkv, Dq)
    v = v.astype(bf16)

    # Head split: static lane slices stacked on a new leading (head) axis.  Cost is
    # O(tile * Dq) relayout work, negligible next to the matmuls, and the
    # projection matmuls above stay flat / lane-dense.
    qf = q_scr[...]                                              # (tq, Dq) bf16
    q_h = jnp.stack([qf[:, h * dim_head:(h + 1) * dim_head] for h in range(heads)], axis=0)
    k_h = jnp.stack([k[:, h * dim_head:(h + 1) * dim_head] for h in range(heads)], axis=0)
    v_h = jnp.stack([v[:, h * dim_head:(h + 1) * dim_head] for h in range(heads)], axis=0)

    s = jnp.einsum('hqd,hkd->hqk', q_h, k_h,
                   preferred_element_type=f32)                   # (H, tq, tkv) f32

    m_prev = m_scr[...]                                          # (H, tq, 1)
    m_new = jnp.maximum(m_prev, jnp.max(s, axis=-1, keepdims=True))
    alpha = jnp.exp(m_prev - m_new)
    p = jnp.exp(s - m_new)                                       # f32 exp (v5e-safe)
    l_scr[...] = alpha * l_scr[...] + jnp.sum(p, axis=-1, keepdims=True)
    acc_scr[...] = alpha * acc_scr[...] + jnp.einsum(
        'hqk,hkd->hqd', p.astype(bf16), v_h, preferred_element_type=f32)
    m_scr[...] = m_new

    # ---- phase 3 (last kv tile): normalize, merge heads, out-proj, residual ----
    @pl.when(kv == n_kv - 1)
    def _():
        o = acc_scr[...] * pl.reciprocal(l_scr[...], approx=True)    # (H, tq, dh)
        # Merge heads back to a flat (tq, Dq) slab, then one full-depth out-proj
        # matmul (no (H, tq, Dq) intermediate, no per-head sum tree).
        o_flat = jnp.concatenate([o[h] for h in range(heads)], axis=-1)
        out = jnp.dot(o_flat.astype(bf16), wo_ref[...],
                      preferred_element_type=f32) + bo_ref[...]
        o_ref[0] = (x_ref[0].astype(f32) + out).astype(o_ref.dtype)


def prepare_attention_params(params, *, heads):
    """Host-side weight prep - call ONCE (not per forward): transpose PyTorch
    (out, in) Linear weights to (in, out), fold the 1/sqrt(dim_head) softmax scale
    into Wq / bq, cast matmul operands to bf16, reshape biases/LN params to (1, Dq)."""
    Dq = params["wq"].shape[0]
    dim_head = Dq // heads
    scale = 1.0 / (dim_head ** 0.5)
    f32, bf16 = jnp.float32, jnp.bfloat16
    return {
        "wq": (params["wq"].T.astype(f32) * scale).astype(bf16),      # (Dq, Dq)
        "bq": (params["bq"].astype(f32) * scale).reshape(1, Dq),
        "wk": params["wk"].T.astype(bf16),                            # (Dc, Dq)
        "bk": params["bk"].astype(f32).reshape(1, Dq),
        "wv": params["wv"].T.astype(bf16),                            # (Dc, Dq)
        "bv": params["bv"].astype(f32).reshape(1, Dq),
        "wo": params["wo"].T.astype(bf16),                            # (Dq, Dq)
        "bo": params["bo"].astype(f32).reshape(1, Dq),
        "gamma": params["ln_gamma"].astype(f32).reshape(1, Dq),
        "beta": params["ln_beta"].astype(f32).reshape(1, Dq),
    }


@functools.partial(jax.jit, static_argnames=("heads",))
def attention_forward(x, context, prepped, *, heads):
    """pallas_call wrapper.  Grid = (batch, q_tiles, kv_tiles)."""
    B, N, Dq = x.shape
    _, M, Dc = context.shape
    dim_head = Dq // heads

    # Tile sizes: whole sequence when short, else 128 query rows / 512 kv rows.
    tq = N if N <= 128 else 128
    tkv = M if M <= 512 else 512
    assert N % tq == 0 and M % tkv == 0, "sequence lengths must divide the tile sizes"

    grid = (B, N // tq, M // tkv)

    def w_spec(shape):
        # Constant-index weights/biases: single pipeline buffer (never re-fetched).
        return pl.BlockSpec(shape, lambda b, qi, ki: (0, 0),
                            pipeline_mode=pl.Buffered(1))

    in_specs = [
        pl.BlockSpec((1, tq, Dq), lambda b, qi, ki: (b, qi, 0)),    # x
        pl.BlockSpec((1, tkv, Dc), lambda b, qi, ki: (b, ki, 0)),   # context
        w_spec((Dq, Dq)),     # wq (bf16, scale folded)
        w_spec((1, Dq)),      # bq (scale folded)
        w_spec((Dc, Dq)),     # wk (bf16)
        w_spec((1, Dq)),      # bk
        w_spec((Dc, Dq)),     # wv (bf16)
        w_spec((1, Dq)),      # bv
        w_spec((Dq, Dq)),     # wo (bf16)
        w_spec((1, Dq)),      # bo
        w_spec((1, Dq)),      # ln gamma
        w_spec((1, Dq)),      # ln beta
    ]
    out_spec = pl.BlockSpec((1, tq, Dq), lambda b, qi, ki: (b, qi, 0))

    kernel = functools.partial(_fused_attention_kernel,
                               heads=heads, dim_head=dim_head, eps=1e-5)

    return pl.pallas_call(
        kernel,
        out_shape=jax.ShapeDtypeStruct((B, N, Dq), x.dtype),
        grid_spec=pltpu.PrefetchScalarGridSpec(
            num_scalar_prefetch=0,
            grid=grid,
            in_specs=in_specs,
            out_specs=out_spec,
            scratch_shapes=[
                pltpu.VMEM((tq, Dq), jnp.bfloat16),              # projected Q (bf16)
                pltpu.VMEM((heads, tq, 1), jnp.float32),         # running max m
                pltpu.VMEM((heads, tq, 1), jnp.float32),         # running denom l
                pltpu.VMEM((heads, tq, dim_head), jnp.float32),  # running PV acc
            ]),
        compiler_params=pltpu.CompilerParams(
            dimension_semantics=("parallel", "parallel", "arbitrary"),
            vmem_limit_bytes=64 * 1024 * 1024),
    )(x, context,
      prepped["wq"], prepped["bq"], prepped["wk"], prepped["bk"],
      prepped["wv"], prepped["bv"], prepped["wo"], prepped["bo"],
      prepped["gamma"], prepped["beta"])


def _reference_forward(x, context, params, *, heads):
    """Pure-JAX f32 reference (mirrors the PyTorch forward with dropout=0)."""
    B, N, Dq = x.shape
    dh = Dq // heads
    mu = jnp.mean(x, axis=-1, keepdims=True)
    var = jnp.mean((x - mu) ** 2, axis=-1, keepdims=True)
    xn = (x - mu) / jnp.sqrt(var + 1e-5)
    xn = xn * params["ln_gamma"] + params["ln_beta"]
    q = xn @ params["wq"].T + params["bq"]
    k = context @ params["wk"].T + params["bk"]
    v = context @ params["wv"].T + params["bv"]

    def split(t):
        b, s, d = t.shape
        return t.reshape(b, s, heads, dh).transpose(0, 2, 1, 3)   # (B, H, S, dh)

    qh, kh, vh = split(q), split(k), split(v)
    s = jnp.einsum("bhqd,bhkd->bhqk", qh, kh) / (dh ** 0.5)
    p = jax.nn.softmax(s, axis=-1)
    o = jnp.einsum("bhqk,bhkd->bhqd", p, vh)
    o = o.transpose(0, 2, 1, 3).reshape(B, N, Dq)
    o = o @ params["wo"].T + params["bo"]
    return x + o


if __name__ == "__main__":
    # Small shapes consistent with the module; query_dim=128 keeps the output
    # lane-dense (multiple of 128), heads=8 -> dim_head=16.
    B, N, M = 2, 8, 8
    query_dim, context_dim, heads = 128, 64, 8

    key = jax.random.PRNGKey(0)
    keys = jax.random.split(key, 8)

    x = jax.random.normal(keys[0], (B, N, query_dim), dtype=jnp.float32)
    context = jax.random.normal(keys[1], (B, M, context_dim), dtype=jnp.float32)

    # Deterministic synthetic parameters (PyTorch Linear weight layout: (out, in)).
    params = {
        "wq": 0.05 * jax.random.normal(keys[2], (query_dim, query_dim), dtype=jnp.float32),
        "bq": 0.01 * jax.random.normal(keys[3], (query_dim,), dtype=jnp.float32),
        "wk": 0.05 * jax.random.normal(keys[4], (query_dim, context_dim), dtype=jnp.float32),
        "bk": 0.01 * jnp.ones((query_dim,), dtype=jnp.float32),
        "wv": 0.05 * jax.random.normal(keys[5], (query_dim, context_dim), dtype=jnp.float32),
        "bv": -0.01 * jnp.ones((query_dim,), dtype=jnp.float32),
        "wo": 0.05 * jax.random.normal(keys[6], (query_dim, query_dim), dtype=jnp.float32),
        "bo": 0.01 * jax.random.normal(keys[7], (query_dim,), dtype=jnp.float32),
        "ln_gamma": 1.0 + 0.1 * jnp.sin(jnp.arange(query_dim, dtype=jnp.float32)),
        "ln_beta": 0.05 * jnp.cos(jnp.arange(query_dim, dtype=jnp.float32)),
    }

    # Weight prep is hoisted out of the forward path (done once, reused per call).
    prepped = prepare_attention_params(params, heads=heads)

    out = attention_forward(x, context, prepped, heads=heads)
    out = jax.block_until_ready(out)

    ref = _reference_forward(x, context, params, heads=heads)
    assert out.shape == (B, N, query_dim)
    max_err = float(jnp.max(jnp.abs(out - ref)))
    assert jnp.allclose(out, ref, atol=2e-2, rtol=2e-2), (
        f"mismatch vs JAX reference (max abs err = {max_err})")

    print("KERNEL_OK")
</pallas_src>

<mosaic_0001>
module attributes {stable_mosaic.version = 11 : i64} {
  func.func @_fused_attention_kernel(%arg0: i32, %arg1: i32, %arg2: i32, %arg3: memref<1x8x128xf32, #tpu.memory_space<vmem>>, %arg4: memref<1x8x64xf32, #tpu.memory_space<vmem>>, %arg5: memref<128x128xbf16, #tpu.memory_space<vmem>>, %arg6: memref<1x128xf32, #tpu.memory_space<vmem>>, %arg7: memref<64x128xbf16, #tpu.memory_space<vmem>>, %arg8: memref<1x128xf32, #tpu.memory_space<vmem>>, %arg9: memref<64x128xbf16, #tpu.memory_space<vmem>>, %arg10: memref<1x128xf32, #tpu.memory_space<vmem>>, %arg11: memref<128x128xbf16, #tpu.memory_space<vmem>>, %arg12: memref<1x128xf32, #tpu.memory_space<vmem>>, %arg13: memref<1x128xf32, #tpu.memory_space<vmem>>, %arg14: memref<1x128xf32, #tpu.memory_space<vmem>>, %arg15: memref<1x8x128xf32, #tpu.memory_space<vmem>>, %arg16: memref<8x128xbf16, #tpu.memory_space<vmem>>, %arg17: memref<8x8x1xf32, #tpu.memory_space<vmem>>, %arg18: memref<8x8x1xf32, #tpu.memory_space<vmem>>, %arg19: memref<8x8x16xf32, #tpu.memory_space<vmem>>) attributes {dimension_semantics = [#tpu.dimension_semantics<parallel>, #tpu.dimension_semantics<parallel>, #tpu.dimension_semantics<arbitrary>], iteration_bounds = array<i64: 2, 1, 1>, scalar_prefetch = 0 : i64, scratch_operands = 4 : i64, tpu.core_type = #tpu.core_type<tc>, window_params = [{transform_indices = @transform_0, window_bounds = array<i64: 1, 8, 128>}, {transform_indices = @transform_1, window_bounds = array<i64: 1, 8, 64>}, {pipeline_mode = #tpu.pipeline_mode<synchronous>, transform_indices = @transform_2, window_bounds = array<i64: 128, 128>}, {pipeline_mode = #tpu.pipeline_mode<synchronous>, transform_indices = @transform_3, window_bounds = array<i64: 1, 128>}, {pipeline_mode = #tpu.pipeline_mode<synchronous>, transform_indices = @transform_4, window_bounds = array<i64: 64, 128>}, {pipeline_mode = #tpu.pipeline_mode<synchronous>, transform_indices = @transform_5, window_bounds = array<i64: 1, 128>}, {pipeline_mode = #tpu.pipeline_mode<synchronous>, transform_indices = @transform_6, window_bounds = array<i64: 64, 128>}, {pipeline_mode = #tpu.pipeline_mode<synchronous>, transform_indices = @transform_7, window_bounds = array<i64: 1, 128>}, {pipeline_mode = #tpu.pipeline_mode<synchronous>, transform_indices = @transform_8, window_bounds = array<i64: 128, 128>}, {pipeline_mode = #tpu.pipeline_mode<synchronous>, transform_indices = @transform_9, window_bounds = array<i64: 1, 128>}, {pipeline_mode = #tpu.pipeline_mode<synchronous>, transform_indices = @transform_10, window_bounds = array<i64: 1, 128>}, {pipeline_mode = #tpu.pipeline_mode<synchronous>, transform_indices = @transform_11, window_bounds = array<i64: 1, 128>}, {transform_indices = @transform_12, window_bounds = array<i64: 1, 8, 128>}]} {
    %c0_i32 = arith.constant 0 : i32
    %0 = arith.cmpi eq, %arg2, %c0_i32 : i32
    %1 = arith.extui %0 : i1 to i32
    %c0_i32_0 = arith.constant 0 : i32
    %2 = arith.cmpi ne, %1, %c0_i32_0 : i32
    scf.if %2 {
      %c0_38 = arith.constant 0 : index
      %c0_39 = arith.constant 0 : index
      %c0_40 = arith.constant 0 : index
      %97 = vector.load %arg3[%c0_38, %c0_39, %c0_40] : memref<1x8x128xf32, #tpu.memory_space<vmem>>, vector<1x8x128xf32>
      %98 = vector.shape_cast %97 : vector<1x8x128xf32> to vector<8x128xf32>
      %cst_41 = arith.constant dense<0.000000e+00> : vector<8xf32>
      %99 = vector.multi_reduction <add>, %98, %cst_41 [1] : vector<8x128xf32> to vector<8xf32>
      %100 = vector.shape_cast %99 : vector<8xf32> to vector<8x1xf32>
      %cst_42 = arith.constant 1.280000e+02 : f32
      %101 = vector.broadcast %cst_42 : f32 to vector<8x1xf32>
      %102 = arith.divf %100, %101 : vector<8x1xf32>
      %103 = vector.broadcast %102 : vector<8x1xf32> to vector<8x128xf32>
      %104 = arith.subf %98, %103 : vector<8x128xf32>
      %105 = vector.broadcast %102 : vector<8x1xf32> to vector<8x128xf32>
      %106 = arith.subf %98, %105 : vector<8x128xf32>
      %107 = arith.mulf %104, %106 : vector<8x128xf32>
      %cst_43 = arith.constant dense<0.000000e+00> : vector<8xf32>
      %108 = vector.multi_reduction <add>, %107, %cst_43 [1] : vector<8x128xf32> to vector<8xf32>
      %109 = vector.shape_cast %108 : vector<8xf32> to vector<8x1xf32>
      %cst_44 = arith.constant 1.280000e+02 : f32
      %110 = vector.broadcast %cst_44 : f32 to vector<8x1xf32>
      %111 = arith.divf %109, %110 : vector<8x1xf32>
      %112 = vector.broadcast %102 : vector<8x1xf32> to vector<8x128xf32>
      %113 = arith.subf %98, %112 : vector<8x128xf32>
      %cst_45 = arith.constant 9.99999974E-6 : f32
      %114 = vector.broadcast %cst_45 : f32 to vector<8x1xf32>
      %115 = arith.addf %111, %114 : vector<8x1xf32>
      %116 = math.rsqrt %115 : vector<8x1xf32>
      %117 = vector.broadcast %116 : vector<8x1xf32> to vector<8x128xf32>
      %118 = arith.mulf %113, %117 : vector<8x128xf32>
      %c0_46 = arith.constant 0 : index
      %c0_47 = arith.constant 0 : index
      %119 = vector.load %arg13[%c0_46, %c0_47] : memref<1x128xf32, #tpu.memory_space<vmem>>, vector<1x128xf32>
      %120 = vector.broadcast %119 : vector<1x128xf32> to vector<8x128xf32>
      %121 = arith.mulf %118, %120 : vector<8x128xf32>
      %c0_48 = arith.constant 0 : index
      %c0_49 = arith.constant 0 : index
      %122 = vector.load %arg14[%c0_48, %c0_49] : memref<1x128xf32, #tpu.memory_space<vmem>>, vector<1x128xf32>
      %123 = vector.broadcast %122 : vector<1x128xf32> to vector<8x128xf32>
      %124 = arith.addf %121, %123 : vector<8x128xf32>
      %125 = arith.truncf %124 : vector<8x128xf32> to vector<8x128xbf16>
      %c0_50 = arith.constant 0 : index
      %c0_51 = arith.constant 0 : index
      %126 = vector.load %arg5[%c0_50, %c0_51] : memref<128x128xbf16, #tpu.memory_space<vmem>>, vector<128x128xbf16>
      %cst_52 = arith.constant dense<0.000000e+00> : vector<8x128xf32>
      %127 = tpu.matmul %125, %126, %cst_52 {dimension_numbers = #tpu.dot_dimension_numbers<[1], [0], [0], [1], [0, 0, 1, 1], [], []>} : vector<8x128xbf16>, vector<128x128xbf16>, vector<8x128xf32> -> vector<8x128xf32>
      %c0_53 = arith.constant 0 : index
      %c0_54 = arith.constant 0 : index
      %128 = vector.load %arg6[%c0_53, %c0_54] : memref<1x128xf32, #tpu.memory_space<vmem>>, vector<1x128xf32>
      %129 = vector.broadcast %128 : vector<1x128xf32> to vector<8x128xf32>
      %130 = arith.addf %127, %129 : vector<8x128xf32>
      %131 = arith.truncf %130 : vector<8x128xf32> to vector<8x128xbf16>
      %c0_55 = arith.constant 0 : index
      %c0_56 = arith.constant 0 : index
      %132 = vector.load %arg16[%c0_55, %c0_56] : memref<8x128xbf16, #tpu.memory_space<vmem>>, vector<8x128xbf16>
      tpu.vector_store %arg16[%c0_55, %c0_56], %131 {strides = array<i32>} : memref<8x128xbf16, #tpu.memory_space<vmem>>, vector<8x128xbf16>,
      %cst_57 = arith.constant 0xFF800000 : f32
      %133 = vector.broadcast %cst_57 : f32 to vector<8x8x1xf32>
      %c0_58 = arith.constant 0 : index
      %c0_59 = arith.constant 0 : index
      %c0_60 = arith.constant 0 : index
      %134 = vector.load %arg17[%c0_58, %c0_59, %c0_60] : memref<8x8x1xf32, #tpu.memory_space<vmem>>, vector<8x8x1xf32>
      tpu.vector_store %arg17[%c0_58, %c0_59, %c0_60], %133 {strides = array<i32>} : memref<8x8x1xf32, #tpu.memory_space<vmem>>, vector<8x8x1xf32>,
      %cst_61 = arith.constant 0.000000e+00 : f32
      %135 = vector.broadcast %cst_61 : f32 to vector<8x8x1xf32>
      %c0_62 = arith.constant 0 : index
      %c0_63 = arith.constant 0 : index
      %c0_64 = arith.constant 0 : index
      %136 = vector.load %arg18[%c0_62, %c0_63, %c0_64] : memref<8x8x1xf32, #tpu.memory_space<vmem>>, vector<8x8x1xf32>
      tpu.vector_store %arg18[%c0_62, %c0_63, %c0_64], %135 {strides = array<i32>} : memref<8x8x1xf32, #tpu.memory_space<vmem>>, vector<8x8x1xf32>,
      %cst_65 = arith.constant 0.000000e+00 : f32
      %137 = vector.broadcast %cst_65 : f32 to vector<8x8x16xf32>
      %c0_66 = arith.constant 0 : index
      %c0_67 = arith.constant 0 : index
      %c0_68 = arith.constant 0 : index
      %138 = vector.load %arg19[%c0_66, %c0_67, %c0_68] : memref<8x8x16xf32, #tpu.memory_space<vmem>>, vector<8x8x16xf32>
      tpu.vector_store %arg19[%c0_66, %c0_67, %c0_68], %137 {strides = array<i32>} : memref<8x8x16xf32, #tpu.memory_space<vmem>>, vector<8x8x16xf32>,
    } else {
    }
    %c0 = arith.constant 0 : index
    %c0_1 = arith.constant 0 : index
    %c0_2 = arith.constant 0 : index
    %3 = vector.load %arg4[%c0, %c0_1, %c0_2] : memref<1x8x64xf32, #tpu.memory_space<vmem>>, vector<1x8x64xf32>
    %4 = vector.shape_cast %3 : vector<1x8x64xf32> to vector<8x64xf32>
    %5 = arith.truncf %4 : vector<8x64xf32> to vector<8x64xbf16>
    %c0_3 = arith.constant 0 : index
    %c0_4 = arith.constant 0 : index
    %6 = vector.load %arg7[%c0_3, %c0_4] : memref<64x128xbf16, #tpu.memory_space<vmem>>, vector<64x128xbf16>
    %cst = arith.constant dense<0.000000e+00> : vector<8x128xf32>
    %7 = tpu.matmul %5, %6, %cst {dimension_numbers = #tpu.dot_dimension_numbers<[1], [0], [0], [1], [0, 0, 1, 1], [], []>} : vector<8x64xbf16>, vector<64x128xbf16>, vector<8x128xf32> -> vector<8x128xf32>
    %c0_5 = arith.constant 0 : index
    %c0_6 = arith.constant 0 : index
    %8 = vector.load %arg8[%c0_5, %c0_6] : memref<1x128xf32, #tpu.memory_space<vmem>>, vector<1x128xf32>
    %9 = vector.broadcast %8 : vector<1x128xf32> to vector<8x128xf32>
    %10 = arith.addf %7, %9 : vector<8x128xf32>
    %c0_7 = arith.constant 0 : index
    %c0_8 = arith.constant 0 : index
    %11 = vector.load %arg9[%c0_7, %c0_8] : memref<64x128xbf16, #tpu.memory_space<vmem>>, vector<64x128xbf16>
    %cst_9 = arith.constant dense<0.000000e+00> : vector<8x128xf32>
    %12 = tpu.matmul %5, %11, %cst_9 {dimension_numbers = #tpu.dot_dimension_numbers<[1], [0], [0], [1], [0, 0, 1, 1], [], []>} : vector<8x64xbf16>, vector<64x128xbf16>, vector<8x128xf32> -> vector<8x128xf32>
    %c0_10 = arith.constant 0 : index
    %c0_11 = arith.constant 0 : index
    %13 = vector.load %arg10[%c0_10, %c0_11] : memref<1x128xf32, #tpu.memory_space<vmem>>, vector<1x128xf32>
    %14 = vector.broadcast %13 : vector<1x128xf32> to vector<8x128xf32>
    %15 = arith.addf %12, %14 : vector<8x128xf32>
    %16 = arith.truncf %10 : vector<8x128xf32> to vector<8x128xbf16>
    %17 = arith.truncf %15 : vector<8x128xf32> to vector<8x128xbf16>
    %c0_12 = arith.constant 0 : index
    %c0_13 = arith.constant 0 : index
    %18 = vector.load %arg16[%c0_12, %c0_13] : memref<8x128xbf16, #tpu.memory_space<vmem>>, vector<8x128xbf16>
    %19 = vector.extract_strided_slice %18 {offsets = [0, 0], sizes = [8, 16], strides = [1, 1]} : vector<8x128xbf16> to vector<8x16xbf16>
    %20 = vector.extract_strided_slice %18 {offsets = [0, 16], sizes = [8, 16], strides = [1, 1]} : vector<8x128xbf16> to vector<8x16xbf16>
    %21 = vector.extract_strided_slice %18 {offsets = [0, 32], sizes = [8, 16], strides = [1, 1]} : vector<8x128xbf16> to vector<8x16xbf16>
    %22 = vector.extract_strided_slice %18 {offsets = [0, 48], sizes = [8, 16], strides = [1, 1]} : vector<8x128xbf16> to vector<8x16xbf16>
    %23 = vector.extract_strided_slice %18 {offsets = [0, 64], sizes = [8, 16], strides = [1, 1]} : vector<8x128xbf16> to vector<8x16xbf16>
    %24 = vector.extract_strided_slice %18 {offsets = [0, 80], sizes = [8, 16], strides = [1, 1]} : vector<8x128xbf16> to vector<8x16xbf16>
    %25 = vector.extract_strided_slice %18 {offsets = [0, 96], sizes = [8, 16], strides = [1, 1]} : vector<8x128xbf16> to vector<8x16xbf16>
    %26 = vector.extract_strided_slice %18 {offsets = [0, 112], sizes = [8, 16], strides = [1, 1]} : vector<8x128xbf16> to vector<8x16xbf16>
    %27 = vector.shape_cast %19 : vector<8x16xbf16> to vector<1x8x16xbf16>
    %28 = vector.shape_cast %20 : vector<8x16xbf16> to vector<1x8x16xbf16>
    %29 = vector.shape_cast %21 : vector<8x16xbf16> to vector<1x8x16xbf16>
    %30 = vector.shape_cast %22 : vector<8x16xbf16> to vector<1x8x16xbf16>
    %31 = vector.shape_cast %23 : vector<8x16xbf16> to vector<1x8x16xbf16>
    %32 = vector.shape_cast %24 : vector<8x16xbf16> to vector<1x8x16xbf16>
    %33 = vector.shape_cast %25 : vector<8x16xbf16> to vector<1x8x16xbf16>
    %34 = vector.shape_cast %26 : vector<8x16xbf16> to vector<1x8x16xbf16>
    %35 = tpu.concatenate %27, %28, %29, %30, %31, %32, %33, %34 in 0 : vector<1x8x16xbf16>, vector<1x8x16xbf16>, vector<1x8x16xbf16>, vector<1x8x16xbf16>, vector<1x8x16xbf16>, vector<1x8x16xbf16>, vector<1x8x16xbf16>, vector<1x8x16xbf16> -> vector<8x8x16xbf16>
    %36 = vector.extract_strided_slice %16 {offsets = [0, 0], sizes = [8, 16], strides = [1, 1]} : vector<8x128xbf16> to vector<8x16xbf16>
    %37 = vector.extract_strided_slice %16 {offsets = [0, 16], sizes = [8, 16], strides = [1, 1]} : vector<8x128xbf16> to vector<8x16xbf16>
    %38 = vector.extract_strided_slice %16 {offsets = [0, 32], sizes = [8, 16], strides = [1, 1]} : vector<8x128xbf16> to vector<8x16xbf16>
    %39 = vector.extract_strided_slice %16 {offsets = [0, 48], sizes = [8, 16], strides = [1, 1]} : vector<8x128xbf16> to vector<8x16xbf16>
    %40 = vector.extract_strided_slice %16 {offsets = [0, 64], sizes = [8, 16], strides = [1, 1]} : vector<8x128xbf16> to vector<8x16xbf16>
    %41 = vector.extract_strided_slice %16 {offsets = [0, 80], sizes = [8, 16], strides = [1, 1]} : vector<8x128xbf16> to vector<8x16xbf16>
    %42 = vector.extract_strided_slice %16 {offsets = [0, 96], sizes = [8, 16], strides = [1, 1]} : vector<8x128xbf16> to vector<8x16xbf16>
    %43 = vector.extract_strided_slice %16 {offsets = [0, 112], sizes = [8, 16], strides = [1, 1]} : vector<8x128xbf16> to vector<8x16xbf16>
    %44 = vector.shape_cast %36 : vector<8x16xbf16> to vector<1x8x16xbf16>
    %45 = vector.shape_cast %37 : vector<8x16xbf16> to vector<1x8x16xbf16>
    %46 = vector.shape_cast %38 : vector<8x16xbf16> to vector<1x8x16xbf16>
    %47 = vector.shape_cast %39 : vector<8x16xbf16> to vector<1x8x16xbf16>
    %48 = vector.shape_cast %40 : vector<8x16xbf16> to vector<1x8x16xbf16>
    %49 = vector.shape_cast %41 : vector<8x16xbf16> to vector<1x8x16xbf16>
    %50 = vector.shape_cast %42 : vector<8x16xbf16> to vector<1x8x16xbf16>
    %51 = vector.shape_cast %43 : vector<8x16xbf16> to vector<1x8x16xbf16>
    %52 = tpu.concatenate %44, %45, %46, %47, %48, %49, %50, %51 in 0 : vector<1x8x16xbf16>, vector<1x8x16xbf16>, vector<1x8x16xbf16>, vector<1x8x16xbf16>, vector<1x8x16xbf16>, vector<1x8x16xbf16>, vector<1x8x16xbf16>, vector<1x8x16xbf16> -> vector<8x8x16xbf16>
    %53 = vector.extract_strided_slice %17 {offsets = [0, 0], sizes = [8, 16], strides = [1, 1]} : vector<8x128xbf16> to vector<8x16xbf16>
    %54 = vector.extract_strided_slice %17 {offsets = [0, 16], sizes = [8, 16], strides = [1, 1]} : vector<8x128xbf16> to vector<8x16xbf16>
    %55 = vector.extract_strided_slice %17 {offsets = [0, 32], sizes = [8, 16], strides = [1, 1]} : vector<8x128xbf16> to vector<8x16xbf16>
    %56 = vector.extract_strided_slice %17 {offsets = [0, 48], sizes = [8, 16], strides = [1, 1]} : vector<8x128xbf16> to vector<8x16xbf16>
    %57 = vector.extract_strided_slice %17 {offsets = [0, 64], sizes = [8, 16], strides = [1, 1]} : vector<8x128xbf16> to vector<8x16xbf16>
    %58 = vector.extract_strided_slice %17 {offsets = [0, 80], sizes = [8, 16], strides = [1, 1]} : vector<8x128xbf16> to vector<8x16xbf16>
    %59 = vector.extract_strided_slice %17 {offsets = [0, 96], sizes = [8, 16], strides = [1, 1]} : vector<8x128xbf16> to vector<8x16xbf16>
    %60 = vector.extract_strided_slice %17 {offsets = [0, 112], sizes = [8, 16], strides = [1, 1]} : vector<8x128xbf16> to vector<8x16xbf16>
    %61 = vector.shape_cast %53 : vector<8x16xbf16> to vector<1x8x16xbf16>
    %62 = vector.shape_cast %54 : vector<8x16xbf16> to vector<1x8x16xbf16>
    %63 = vector.shape_cast %55 : vector<8x16xbf16> to vector<1x8x16xbf16>
    %64 = vector.shape_cast %56 : vector<8x16xbf16> to vector<1x8x16xbf16>
    %65 = vector.shape_cast %57 : vector<8x16xbf16> to vector<1x8x16xbf16>
    %66 = vector.shape_cast %58 : vector<8x16xbf16> to vector<1x8x16xbf16>
    %67 = vector.shape_cast %59 : vector<8x16xbf16> to vector<1x8x16xbf16>
    %68 = vector.shape_cast %60 : vector<8x16xbf16> to vector<1x8x16xbf16>
    %69 = tpu.concatenate %61, %62, %63, %64, %65, %66, %67, %68 in 0 : vector<1x8x16xbf16>, vector<1x8x16xbf16>, vector<1x8x16xbf16>, vector<1x8x16xbf16>, vector<1x8x16xbf16>, vector<1x8x16xbf16>, vector<1x8x16xbf16>, vector<1x8x16xbf16> -> vector<8x8x16xbf16>
    "tpu.trace_start"() <{level = 10 : i32, message = "hqd,hkd->hqk"}> : () -> ()
    %cst_14 = arith.constant dense<0.000000e+00> : vector<8x8x8xf32>
    %70 = tpu.matmul %35, %52, %cst_14 {dimension_numbers = #tpu.dot_dimension_numbers<[2], [2], [1], [1], [0, 0, 0, 1, 1, 1], [0], [0]>} : vector<8x8x16xbf16>, vector<8x8x16xbf16>, vector<8x8x8xf32> -> vector<8x8x8xf32>
    "tpu.trace_stop"() : () -> ()
    %c0_15 = arith.constant 0 : index
    %c0_16 = arith.constant 0 : index
    %c0_17 = arith.constant 0 : index
    %71 = vector.load %arg17[%c0_15, %c0_16, %c0_17] : memref<8x8x1xf32, #tpu.memory_space<vmem>>, vector<8x8x1xf32>
    %cst_18 = arith.constant dense<0xFF800000> : vector<8x8xf32>
    %72 = vector.multi_reduction <maximumf>, %70, %cst_18 [2] : vector<8x8x8xf32> to vector<8x8xf32>
    %73 = vector.shape_cast %72 : vector<8x8xf32> to vector<8x8x1xf32>
    %74 = arith.maximumf %71, %73 : vector<8x8x1xf32>
    %75 = arith.subf %71, %74 : vector<8x8x1xf32>
    %76 = math.exp %75 : vector<8x8x1xf32>
    %77 = vector.broadcast %74 : vector<8x8x1xf32> to vector<8x8x8xf32>
    %78 = arith.subf %70, %77 : vector<8x8x8xf32>
    %79 = math.exp %78 : vector<8x8x8xf32>
    %c0_19 = arith.constant 0 : index
    %c0_20 = arith.constant 0 : index
    %c0_21 = arith.constant 0 : index
    %80 = vector.load %arg18[%c0_19, %c0_20, %c0_21] : memref<8x8x1xf32, #tpu.memory_space<vmem>>, vector<8x8x1xf32>
    %81 = arith.mulf %76, %80 : vector<8x8x1xf32>
    %cst_22 = arith.constant dense<0.000000e+00> : vector<8x8xf32>
    %82 = vector.multi_reduction <add>, %79, %cst_22 [2] : vector<8x8x8xf32> to vector<8x8xf32>
    %83 = vector.shape_cast %82 : vector<8x8xf32> to vector<8x8x1xf32>
    %84 = arith.addf %81, %83 : vector<8x8x1xf32>
    %c0_23 = arith.constant 0 : index
    %c0_24 = arith.constant 0 : index
    %c0_25 = arith.constant 0 : index
    %85 = vector.load %arg18[%c0_23, %c0_24, %c0_25] : memref<8x8x1xf32, #tpu.memory_space<vmem>>, vector<8x8x1xf32>
    tpu.vector_store %arg18[%c0_23, %c0_24, %c0_25], %84 {strides = array<i32>} : memref<8x8x1xf32, #tpu.memory_space<vmem>>, vector<8x8x1xf32>,
    %c0_26 = arith.constant 0 : index
    %c0_27 = arith.constant 0 : index
    %c0_28 = arith.constant 0 : index
    %86 = vector.load %arg19[%c0_26, %c0_27, %c0_28] : memref<8x8x16xf32, #tpu.memory_space<vmem>>, vector<8x8x16xf32>
    %87 = vector.broadcast %76 : vector<8x8x1xf32> to vector<8x8x16xf32>
    %88 = arith.mulf %87, %86 : vector<8x8x16xf32>
    %89 = arith.truncf %79 : vector<8x8x8xf32> to vector<8x8x8xbf16>
    "tpu.trace_start"() <{level = 10 : i32, message = "hqk,hkd->hqd"}> : () -> ()
    %cst_29 = arith.constant dense<0.000000e+00> : vector<8x8x16xf32>
    %90 = tpu.matmul %89, %69, %cst_29 {dimension_numbers = #tpu.dot_dimension_numbers<[2], [1], [1], [2], [0, 0, 0, 1, 1, 2], [0], [0]>} : vector<8x8x8xbf16>, vector<8x8x16xbf16>, vector<8x8x16xf32> -> vector<8x8x16xf32>
    "tpu.trace_stop"() : () -> ()
    %91 = arith.addf %88, %90 : vector<8x8x16xf32>
    %c0_30 = arith.constant 0 : index
    %c0_31 = arith.constant 0 : index
    %c0_32 = arith.constant 0 : index
    %92 = vector.load %arg19[%c0_30, %c0_31, %c0_32] : memref<8x8x16xf32, #tpu.memory_space<vmem>>, vector<8x8x16xf32>
    tpu.vector_store %arg19[%c0_30, %c0_31, %c0_32], %91 {strides = array<i32>} : memref<8x8x16xf32, #tpu.memory_space<vmem>>, vector<8x8x16xf32>,
    %c0_33 = arith.constant 0 : index
    %c0_34 = arith.constant 0 : index
    %c0_35 = arith.constant 0 : index
    %93 = vector.load %arg17[%c0_33, %c0_34, %c0_35] : memref<8x8x1xf32, #tpu.memory_space<vmem>>, vector<8x8x1xf32>
    tpu.vector_store %arg17[%c0_33, %c0_34, %c0_35], %74 {strides = array<i32>} : memref<8x8x1xf32, #tpu.memory_space<vmem>>, vector<8x8x1xf32>,
    %c0_i32_36 = arith.constant 0 : i32
    %94 = arith.cmpi eq, %arg2, %c0_i32_36 : i32
    %95 = arith.extui %94 : i1 to i32
    %c0_i32_37 = arith.constant 0 : i32
    %96 = arith.cmpi ne, %95, %c0_i32_37 : i32
    scf.if %96 {
      %c0_38 = arith.constant 0 : index
      %c0_39 = arith.constant 0 : index
      %c0_40 = arith.constant 0 : index
      %97 = vector.load %arg19[%c0_38, %c0_39, %c0_40] : memref<8x8x16xf32, #tpu.memory_space<vmem>>, vector<8x8x16xf32>
      %c0_41 = arith.constant 0 : index
      %c0_42 = arith.constant 0 : index
      %c0_43 = arith.constant 0 : index
      %98 = vector.load %arg18[%c0_41, %c0_42, %c0_43] : memref<8x8x1xf32, #tpu.memory_space<vmem>>, vector<8x8x1xf32>
      %99 = tpu.reciprocal %98 {approx = true} : vector<8x8x1xf32> -> vector<8x8x1xf32>
      %100 = vector.broadcast %99 : vector<8x8x1xf32> to vector<8x8x16xf32>
      %101 = arith.mulf %97, %100 : vector<8x8x16xf32>
      %102 = vector.extract_strided_slice %101 {offsets = [0, 0, 0], sizes = [1, 8, 16], strides = [1, 1, 1]} : vector<8x8x16xf32> to vector<1x8x16xf32>
      %103 = vector.shape_cast %102 : vector<1x8x16xf32> to vector<8x16xf32>
      %104 = vector.extract_strided_slice %101 {offsets = [1, 0, 0], sizes = [1, 8, 16], strides = [1, 1, 1]} : vector<8x8x16xf32> to vector<1x8x16xf32>
      %105 = vector.shape_cast %104 : vector<1x8x16xf32> to vector<8x16xf32>
      %106 = vector.extract_strided_slice %101 {offsets = [2, 0, 0], sizes = [1, 8, 16], strides = [1, 1, 1]} : vector<8x8x16xf32> to vector<1x8x16xf32>
      %107 = vector.shape_cast %106 : vector<1x8x16xf32> to vector<8x16xf32>
      %108 = vector.extract_strided_slice %101 {offsets = [3, 0, 0], sizes = [1, 8, 16], strides = [1, 1, 1]} : vector<8x8x16xf32> to vector<1x8x16xf32>
      %109 = vector.shape_cast %108 : vector<1x8x16xf32> to vector<8x16xf32>
      %110 = vector.extract_strided_slice %101 {offsets = [4, 0, 0], sizes = [1, 8, 16], strides = [1, 1, 1]} : vector<8x8x16xf32> to vector<1x8x16xf32>
      %111 = vector.shape_cast %110 : vector<1x8x16xf32> to vector<8x16xf32>
      %112 = vector.extract_strided_slice %101 {offsets = [5, 0, 0], sizes = [1, 8, 16], strides = [1, 1, 1]} : vector<8x8x16xf32> to vector<1x8x16xf32>
      %113 = vector.shape_cast %112 : vector<1x8x16xf32> to vector<8x16xf32>
      %114 = vector.extract_strided_slice %101 {offsets = [6, 0, 0], sizes = [1, 8, 16], strides = [1, 1, 1]} : vector<8x8x16xf32> to vector<1x8x16xf32>
      %115 = vector.shape_cast %114 : vector<1x8x16xf32> to vector<8x16xf32>
      %116 = vector.extract_strided_slice %101 {offsets = [7, 0, 0], sizes = [1, 8, 16], strides = [1, 1, 1]} : vector<8x8x16xf32> to vector<1x8x16xf32>
      %117 = vector.shape_cast %116 : vector<1x8x16xf32> to vector<8x16xf32>
      %118 = tpu.concatenate %103, %105, %107, %109, %111, %113, %115, %117 in 1 : vector<8x16xf32>, vector<8x16xf32>, vector<8x16xf32>, vector<8x16xf32>, vector<8x16xf32>, vector<8x16xf32>, vector<8x16xf32>, vector<8x16xf32> -> vector<8x128xf32>
      %119 = arith.truncf %118 : vector<8x128xf32> to vector<8x128xbf16>
      %c0_44 = arith.constant 0 : index
      %c0_45 = arith.constant 0 : index
      %120 = vector.load %arg11[%c0_44, %c0_45] : memref<128x128xbf16, #tpu.memory_space<vmem>>, vector<128x128xbf16>
      %cst_46 = arith.constant dense<0.000000e+00> : vector<8x128xf32>
      %121 = tpu.matmul %119, %120, %cst_46 {dimension_numbers = #tpu.dot_dimension_numbers<[1], [0], [0], [1], [0, 0, 1, 1], [], []>} : vector<8x128xbf16>, vector<128x128xbf16>, vector<8x128xf32> -> vector<8x128xf32>
      %c0_47 = arith.constant 0 : index
      %c0_48 = arith.constant 0 : index
      %122 = vector.load %arg12[%c0_47, %c0_48] : memref<1x128xf32, #tpu.memory_space<vmem>>, vector<1x128xf32>
      %123 = vector.broadcast %122 : vector<1x128xf32> to vector<8x128xf32>
      %124 = arith.addf %121, %123 : vector<8x128xf32>
      %c0_49 = arith.constant 0 : index
      %c0_50 = arith.constant 0 : index
      %c0_51 = arith.constant 0 : index
      %125 = vector.load %arg3[%c0_49, %c0_50, %c0_51] : memref<1x8x128xf32, #tpu.memory_space<vmem>>, vector<1x8x128xf32>
      %126 = vector.shape_cast %125 : vector<1x8x128xf32> to vector<8x128xf32>
      %127 = arith.addf %126, %124 : vector<8x128xf32>
      %c0_52 = arith.constant 0 : index
      %c0_53 = arith.constant 0 : index
      %c0_54 = arith.constant 0 : index
      %128 = vector.load %arg15[%c0_52, %c0_53, %c0_54] : memref<1x8x128xf32, #tpu.memory_space<vmem>>, vector<1x8x128xf32>
      %129 = vector.shape_cast %128 : vector<1x8x128xf32> to vector<8x128xf32>
      %130 = vector.shape_cast %127 : vector<8x128xf32> to vector<1x8x128xf32>
      tpu.vector_store %arg15[%c0_52, %c0_53, %c0_54], %130 {strides = array<i32>} : memref<1x8x128xf32, #tpu.memory_space<vmem>>, vector<1x8x128xf32>,
    } else {
    }
    return
  }
  func.func @transform_0(%arg0: i32, %arg1: i32, %arg2: i32) -> (i32, i32, i32) {
    %c0_i32 = arith.constant 0 : i32
    %c0_i32_0 = arith.constant 0 : i32
    return %arg0, %arg1, %c0_i32 : i32, i32, i32
  }
  func.func @transform_1(%arg0: i32, %arg1: i32, %arg2: i32) -> (i32, i32, i32) {
    %c0_i32 = arith.constant 0 : i32
    %c0_i32_0 = arith.constant 0 : i32
    return %arg0, %arg2, %c0_i32 : i32, i32, i32
  }
  func.func @transform_2(%arg0: i32, %arg1: i32, %arg2: i32) -> (i32, i32) {
    %c0_i32 = arith.constant 0 : i32
    %c0_i32_0 = arith.constant 0 : i32
    %c0_i32_1 = arith.constant 0 : i32
    return %c0_i32, %c0_i32_0 : i32, i32
  }
  func.func @transform_3(%arg0: i32, %arg1: i32, %arg2: i32) -> (i32, i32) {
    %c0_i32 = arith.constant 0 : i32
    %c0_i32_0 = arith.constant 0 : i32
    %c0_i32_1 = arith.constant 0 : i32
    return %c0_i32, %c0_i32_0 : i32, i32
  }
  func.func @transform_4(%arg0: i32, %arg1: i32, %arg2: i32) -> (i32, i32) {
    %c0_i32 = arith.constant 0 : i32
    %c0_i32_0 = arith.constant 0 : i32
    %c0_i32_1 = arith.constant 0 : i32
    return %c0_i32, %c0_i32_0 : i32, i32
  }
  func.func @transform_5(%arg0: i32, %arg1: i32, %arg2: i32) -> (i32, i32) {
    %c0_i32 = arith.constant 0 : i32
    %c0_i32_0 = arith.constant 0 : i32
    %c0_i32_1 = arith.constant 0 : i32
    return %c0_i32, %c0_i32_0 : i32, i32
  }
  func.func @transform_6(%arg0: i32, %arg1: i32, %arg2: i32) -> (i32, i32) {
    %c0_i32 = arith.constant 0 : i32
    %c0_i32_0 = arith.constant 0 : i32
    %c0_i32_1 = arith.constant 0 : i32
    return %c0_i32, %c0_i32_0 : i32, i32
  }
  func.func @transform_7(%arg0: i32, %arg1: i32, %arg2: i32) -> (i32, i32) {
    %c0_i32 = arith.constant 0 : i32
    %c0_i32_0 = arith.constant 0 : i32
    %c0_i32_1 = arith.constant 0 : i32
    return %c0_i32, %c0_i32_0 : i32, i32
  }
  func.func @transform_8(%arg0: i32, %arg1: i32, %arg2: i32) -> (i32, i32) {
    %c0_i32 = arith.constant 0 : i32
    %c0_i32_0 = arith.constant 0 : i32
    %c0_i32_1 = arith.constant 0 : i32
    return %c0_i32, %c0_i32_0 : i32, i32
  }
  func.func @transform_9(%arg0: i32, %arg1: i32, %arg2: i32) -> (i32, i32) {
    %c0_i32 = arith.constant 0 : i32
    %c0_i32_0 = arith.constant 0 : i32
    %c0_i32_1 = arith.constant 0 : i32
    return %c0_i32, %c0_i32_0 : i32, i32
  }
  func.func @transform_10(%arg0: i32, %arg1: i32, %arg2: i32) -> (i32, i32) {
    %c0_i32 = arith.constant 0 : i32
    %c0_i32_0 = arith.constant 0 : i32
    %c0_i32_1 = arith.constant 0 : i32
    return %c0_i32, %c0_i32_0 : i32, i32
  }
  func.func @transform_11(%arg0: i32, %arg1: i32, %arg2: i32) -> (i32, i32) {
    %c0_i32 = arith.constant 0 : i32
    %c0_i32_0 = arith.constant 0 : i32
    %c0_i32_1 = arith.constant 0 : i32
    return %c0_i32, %c0_i32_0 : i32, i32
  }
  func.func @transform_12(%arg0: i32, %arg1: i32, %arg2: i32) -> (i32, i32, i32) {
    %c0_i32 = arith.constant 0 : i32
    %c0_i32_0 = arith.constant 0 : i32
    return %arg0, %arg1, %c0_i32 : i32, i32, i32
  }
}

</mosaic_0001>

<llo_original>
// kernel: attention_forward.1
$region0: #{attention_forward.1}
  #allocation0 [shape = 'u32[]', space=smem, size = 0x4, offset = 0x4, fixed_abs, tag = 'smem constant byte address 0x4 - core index']
  #allocation1 [shape = 'u32[72,128]{1,0:T(1,128)}', space=vmem, size = 0x9000, scoped, tag = 'internal scratch']
  #allocation2 [shape = 'bf16[8,128]{1,0:T(8,128)(2,1)}', space=vmem, size = 0x800, scoped, tag = 'scratch operand']
  #allocation3 [shape = 'f32[8,8,1]{2,1,0:T(8,128)}', space=vmem, size = 0x8000, scoped, tag = 'scratch operand']
  #allocation4 [shape = 'f32[8,8,1]{2,1,0:T(8,128)}', space=vmem, size = 0x8000, scoped, tag = 'scratch operand']
  #allocation5 [shape = 'f32[8,8,16]{2,1,0:T(8,128)}', space=vmem, size = 0x8000, scoped, tag = 'scratch operand']
  %s0 = inlined_call_operand.hbm [shape: f32[2,8,128], index: 0, kind: input, shape index: {}]
  %s1 = inlined_call_operand.hbm [shape: f32[2,8,64], index: 1, kind: input, shape index: {}]
  %s2 = inlined_call_operand.hbm [shape: bf16[128,128], index: 2, kind: input, shape index: {}]
  %s3 = inlined_call_operand.vmem [shape: f32[1,128], index: 3, kind: input, shape index: {}]
  %s4 = inlined_call_operand.hbm [shape: bf16[64,128], index: 4, kind: input, shape index: {}]
  %s5 = inlined_call_operand.vmem [shape: f32[1,128], index: 5, kind: input, shape index: {}]
  %s6 = inlined_call_operand.hbm [shape: bf16[64,128], index: 6, kind: input, shape index: {}]
  %s7 = inlined_call_operand.vmem [shape: f32[1,128], index: 7, kind: input, shape index: {}]
  %s8 = inlined_call_operand.hbm [shape: bf16[128,128], index: 8, kind: input, shape index: {}]
  %s9 = inlined_call_operand.hbm [shape: f32[1,128], index: 9, kind: input, shape index: {}]
  %s10 = inlined_call_operand.vmem [shape: f32[1,128], index: 10, kind: input, shape index: {}]
  %s11 = inlined_call_operand.hbm [shape: f32[1,128], index: 11, kind: input, shape index: {}]
  %s12 = inlined_call_operand.hbm [shape: f32[2,8,128], index: 12, kind: output, shape index: {}]
  %s13 = sld [smem:[#allocation0]]
  $region121: #{attention_forward.1} parent=0
    _
  %s15 = ssub.s32 1, %s13
  %s16 = scalar_select 0, %s15, %s13
  $region1: #{attention_forward.1} parent=0
    #allocation6 [shape = 'u8[8192]{0}', space=vmem, size = 0x2000, scoped, tag = 'input window, operand 0']
    #allocation7 [shape = 's32[2]{0}', space=sflag, size = 0x8, scoped, tag = 'scoped memory for attention_forward.1']
    #allocation8 [shape = 's32[2]{0}', space=sflag, size = 0x8, scoped, tag = 'scoped memory for attention_forward.1']
    #allocation9 [shape = 'u8[8192]{0}', space=vmem, size = 0x2000, scoped, tag = 'input window, operand 1']
    #allocation10 [shape = 's32[2]{0}', space=sflag, size = 0x8, scoped, tag = 'scoped memory for attention_forward.1']
    #allocation11 [shape = 'u8[32768]{0}', space=vmem, size = 0x8000, scoped, tag = 'input window, operand 2, single buffered']
    #allocation12 [shape = 'u8[16384]{0}', space=vmem, size = 0x4000, scoped, tag = 'input window, operand 4, single buffered']
    #allocation13 [shape = 's32[1]{0}', space=sflag, size = 0x4, scoped, tag = 'scoped memory for attention_forward.1']
    #allocation14 [shape = 'u8[16384]{0}', space=vmem, size = 0x4000, scoped, tag = 'input window, operand 6, single buffered']
    #allocation15 [shape = 'u8[32768]{0}', space=vmem, size = 0x8000, scoped, tag = 'input window, operand 8, single buffered']
    #allocation16 [shape = 's32[1]{0}', space=sflag, size = 0x4, scoped, tag = 'scoped memory for attention_forward.1']
    #allocation17 [shape = 'u8[512]{0}', space=vmem, size = 0x400, scoped, tag = 'input window, operand 9, single buffered']
    #allocation18 [shape = 'u8[512]{0}', space=vmem, size = 0x400, scoped, tag = 'input window, operand 11, single buffered']
    #allocation19 [shape = 's32[1]{0}', space=sflag, size = 0x4, scoped, tag = 'scoped memory for attention_forward.1']
    #allocation20 [shape = 'u8[8192]{0}', space=vmem, size = 0x2000, scoped, tag = 'output window, operand 0']
    %17 = vsyncpa [#allocation7], 0
    %s18 = scalar_lea.sflag [#allocation7], 1
    %19 = vsyncpa %s18, 0
    %20 = vsyncpa [#allocation10], 0
    %s21 = scalar_lea.sflag [#allocation10], 1
    %22 = vsyncpa %s21, 0
    %23 = vsyncpa [#allocation13], 0
    %24 = vsyncpa [#allocation16], 0
    %25 = vsyncpa [#allocation19], 0
    %26 = vsyncpa [#allocation8], 0
    %s27 = scalar_lea.sflag [#allocation8], 1
    %28 = vsyncpa %s27, 0
    loop: start=0, step=1, limit=4
    $region2: #{attention_forward.1} parent=1 // loop_pre_header
      _
    $region3: #{attention_forward.1} parent=1 // loop_header
      %s30 = sphi 0, %s34
      %p31 = scmp.ge.s32.totalorder %s30, 4
      %s37 = sphi 0, %s56
      %s38 = sphi 0, %s52
      %s39 = sphi 0, %s48
      %s40 = sphi 0, %s37
      %s41 = sphi 0, %s38
      %s42 = sphi 0, %s39
      %s43 = sphi 0, %s40
      %s44 = sphi 0, %s41
      %s45 = sphi 0, %s42
      %s61 = sphi 0, %s63
      %s64 = sphi 0, %s61
      %s65 = sphi 0, %s64
      %s81 = sphi 0, %s65
      %s89 = sphi 0, %s91
      %s92 = sphi 0, %s89
      %s93 = sphi 0, %s92
      %s109 = sphi 0, %s93
      %s113 = sphi 0, %s113
      %s115 = sphi 0, %s113
      %s116 = sphi 0, %s115
      %s130 = sphi 0, %s116
      %s134 = sphi 0, %s134
      %s136 = sphi 0, %s134
      %s137 = sphi 0, %s136
      %s151 = sphi 0, %s137
      %s155 = sphi 0, %s155
      %s157 = sphi 0, %s155
      %s158 = sphi 0, %s157
      %s172 = sphi 0, %s158
      %s176 = sphi 0, %s176
      %s178 = sphi 0, %s176
      %s179 = sphi 0, %s178
      %s193 = sphi 0, %s179
      %s197 = sphi 0, %s197
      %s199 = sphi 0, %s197
      %s200 = sphi 0, %s199
      %s214 = sphi 0, %s200
      %s218 = sphi 0, %s218
      %s220 = sphi 0, %s218
      %s221 = sphi 0, %s220
      %s235 = sphi 0, %s221
      %s239 = sphi 0, %s239
      %s241 = sphi 0, %s239
      %s242 = sphi 0, %s241
      %s256 = sphi 0, %s242
      %s260 = sphi 0, %s260
      %s262 = sphi 0, %s260
      %s263 = sphi 0, %s262
      %s277 = sphi 0, %s263
      %s281 = sphi 0, %s281
      %s283 = sphi 0, %s281
      %s284 = sphi 0, %s283
      %s298 = sphi 0, %s284
      %s302 = sphi 0, %s302
      %s304 = sphi 0, %s302
      %s305 = sphi 0, %s304
      %s319 = sphi 0, %s305
      %s327 = sphi 0, %s329
      %s330 = sphi 0, %s327
      %s331 = sphi 0, %s330
      %s347 = sphi 0, %s331
    $region4: #{attention_forward.1} parent=1 // loop_header_branch
      %33 = sbr.rel (%p31) target = $region8
    $region5: #{attention_forward.1} parent=1 // loop_body
      %s35 = ssub.s32 %s30, 1
      %s36 = ssub.s32 %s30, 2
      %s46 = sadd.s32 1, %s39
      %p47 = scmp.ge.s32.totalorder %s46, 1
      %s48 = scalar_select %p47, 0, %s46
      %s49 = sadd.s32 1, %s38
      %s50 = scalar_select %p47, %s49, %s38
      %p51 = scmp.ge.s32.totalorder %s50, 1
      %s52 = scalar_select %p51, 0, %s50
      %s53 = sadd.s32 1, %s37
      %s54 = scalar_select %p51, %s53, %s37
      %p55 = scmp.ge.s32.totalorder %s54, 2
      %s56 = scalar_select %p55, 0, %s54
      %s57 = ssub.s32 %s37, %s56
      %s58 = ssub.s32 %s38, %s52
      %s59 = sor.u32 %s57, %s58
      %p60 = scmp.eq.s32.totalorder %s59, 0
      %s62 = sadd.s32 %s61, 1
      %s63 = scalar_select %p60, %s61, %s62
      %p66 = pneg %p60
      %p67 = scmp.eq.s32.totalorder %s30, 1
      %p68 = por %p66, %p67
      %p69 = scmp.ne.s32.totalorder %s61, %s64
      %p70 = scmp.eq.s32.totalorder %s30, 0
      %p71 = por %p69, %p70
      %p72 = scmp.ne.s32.totalorder %s61, %s64
      %p73 = scmp.eq.s32.totalorder %s35, 1
      %p74 = por %p72, %p73
      %p75 = scmp.ne.s32.totalorder %s64, %s65
      %p76 = scmp.eq.s32.totalorder %s35, 0
      %p77 = por %p75, %p76
      %p78 = scmp.ne.s32.totalorder %s64, %s65
      %p79 = scmp.eq.s32.totalorder %s36, 1
      %p80 = por %p78, %p79
      %p82 = scmp.ne.s32.totalorder %s65, %s81
      %p83 = scmp.eq.s32.totalorder %s36, 0
      %p84 = por %p82, %p83
      %s85 = ssub.s32 %s37, %s56
      %s86 = ssub.s32 %s39, %s48
      %s87 = sor.u32 %s85, %s86
      %p88 = scmp.eq.s32.totalorder %s87, 0
      %s90 = sadd.s32 %s89, 1
      %s91 = scalar_select %p88, %s89, %s90
      %p94 = pneg %p88
      %p95 = scmp.eq.s32.totalorder %s30, 1
      %p96 = por %p94, %p95
      %p97 = scmp.ne.s32.totalorder %s89, %s92
      %p98 = scmp.eq.s32.totalorder %s30, 0
      %p99 = por %p97, %p98
      %p100 = scmp.ne.s32.totalorder %s89, %s92
      %p101 = scmp.eq.s32.totalorder %s35, 1
      %p102 = por %p100, %p101
      %p103 = scmp.ne.s32.totalorder %s92, %s93
      %p104 = scmp.eq.s32.totalorder %s35, 0
      %p105 = por %p103, %p104
      %p106 = scmp.ne.s32.totalorder %s92, %s93
      %p107 = scmp.eq.s32.totalorder %s36, 1
      %p108 = por %p106, %p107
      %p110 = scmp.ne.s32.totalorder %s93, %s109
      %p111 = scmp.eq.s32.totalorder %s36, 0
      %p112 = por %p110, %p111
      %s114 = sadd.s32 %s113, 1
      %p117 = scmp.eq.s32.totalorder %s30, 1
      %p118 = scmp.ne.s32.totalorder %s113, %s115
      %p119 = scmp.eq.s32.totalorder %s30, 0
      %p120 = por %p118, %p119
      %p121 = scmp.ne.s32.totalorder %s113, %s115
      %p122 = scmp.eq.s32.totalorder %s35, 1
      %p123 = por %p121, %p122
      %p124 = scmp.ne.s32.totalorder %s115, %s116
      %p125 = scmp.eq.s32.totalorder %s35, 0
      %p126 = por %p124, %p125
      %p127 = scmp.ne.s32.totalorder %s115, %s116
      %p128 = scmp.eq.s32.totalorder %s36, 1
      %p129 = por %p127, %p128
      %p131 = scmp.ne.s32.totalorder %s116, %s130
      %p132 = scmp.eq.s32.totalorder %s36, 0
      %p133 = por %p131, %p132
      %s135 = sadd.s32 %s134, 1
      %p138 = scmp.eq.s32.totalorder %s30, 1
      %p139 = scmp.ne.s32.totalorder %s134, %s136
      %p140 = scmp.eq.s32.totalorder %s30, 0
      %p141 = por %p139, %p140
      %p142 = scmp.ne.s32.totalorder %s134, %s136
      %p143 = scmp.eq.s32.totalorder %s35, 1
      %p144 = por %p142, %p143
      %p145 = scmp.ne.s32.totalorder %s136, %s137
      %p146 = scmp.eq.s32.totalorder %s35, 0
      %p147 = por %p145, %p146
      %p148 = scmp.ne.s32.totalorder %s136, %s137
      %p149 = scmp.eq.s32.totalorder %s36, 1
      %p150 = por %p148, %p149
      %p152 = scmp.ne.s32.totalorder %s137, %s151
      %p153 = scmp.eq.s32.totalorder %s36, 0
      %p154 = por %p152, %p153
      %s156 = sadd.s32 %s155, 1
      %p159 = scmp.eq.s32.totalorder %s30, 1
      %p160 = scmp.ne.s32.totalorder %s155, %s157
      %p161 = scmp.eq.s32.totalorder %s30, 0
      %p162 = por %p160, %p161
      %p163 = scmp.ne.s32.totalorder %s155, %s157
      %p164 = scmp.eq.s32.totalorder %s35, 1
      %p165 = por %p163, %p164
      %p166 = scmp.ne.s32.totalorder %s157, %s158
      %p167 = scmp.eq.s32.totalorder %s35, 0
      %p168 = por %p166, %p167
      %p169 = scmp.ne.s32.totalorder %s157, %s158
      %p170 = scmp.eq.s32.totalorder %s36, 1
      %p171 = por %p169, %p170
      %p173 = scmp.ne.s32.totalorder %s158, %s172
      %p174 = scmp.eq.s32.totalorder %s36, 0
      %p175 = por %p173, %p174
      %s177 = sadd.s32 %s176, 1
      %p180 = scmp.eq.s32.totalorder %s30, 1
      %p181 = scmp.ne.s32.totalorder %s176, %s178
      %p182 = scmp.eq.s32.totalorder %s30, 0
      %p183 = por %p181, %p182
      %p184 = scmp.ne.s32.totalorder %s176, %s178
      %p185 = scmp.eq.s32.totalorder %s35, 1
      %p186 = por %p184, %p185
      %p187 = scmp.ne.s32.totalorder %s178, %s179
      %p188 = scmp.eq.s32.totalorder %s35, 0
      %p189 = por %p187, %p188
      %p190 = scmp.ne.s32.totalorder %s178, %s179
      %p191 = scmp.eq.s32.totalorder %s36, 1
      %p192 = por %p190, %p191
      %p194 = scmp.ne.s32.totalorder %s179, %s193
      %p195 = scmp.eq.s32.totalorder %s36, 0
      %p196 = por %p194, %p195
      %s198 = sadd.s32 %s197, 1
      %p201 = scmp.eq.s32.totalorder %s30, 1
      %p202 = scmp.ne.s32.totalorder %s197, %s199
      %p203 = scmp.eq.s32.totalorder %s30, 0
      %p204 = por %p202, %p203
      %p205 = scmp.ne.s32.totalorder %s197, %s199
      %p206 = scmp.eq.s32.totalorder %s35, 1
      %p207 = por %p205, %p206
      %p208 = scmp.ne.s32.totalorder %s199, %s200
      %p209 = scmp.eq.s32.totalorder %s35, 0
      %p210 = por %p208, %p209
      %p211 = scmp.ne.s32.totalorder %s199, %s200
      %p212 = scmp.eq.s32.totalorder %s36, 1
      %p213 = por %p211, %p212
      %p215 = scmp.ne.s32.totalorder %s200, %s214
      %p216 = scmp.eq.s32.totalorder %s36, 0
      %p217 = por %p215, %p216
      %s219 = sadd.s32 %s218, 1
      %p222 = scmp.eq.s32.totalorder %s30, 1
      %p223 = scmp.ne.s32.totalorder %s218, %s220
      %p224 = scmp.eq.s32.totalorder %s30, 0
      %p225 = por %p223, %p224
      %p226 = scmp.ne.s32.totalorder %s218, %s220
      %p227 = scmp.eq.s32.totalorder %s35, 1
      %p228 = por %p226, %p227
      %p229 = scmp.ne.s32.totalorder %s220, %s221
      %p230 = scmp.eq.s32.totalorder %s35, 0
      %p231 = por %p229, %p230
      %p232 = scmp.ne.s32.totalorder %s220, %s221
      %p233 = scmp.eq.s32.totalorder %s36, 1
      %p234 = por %p232, %p233
      %p236 = scmp.ne.s32.totalorder %s221, %s235
      %p237 = scmp.eq.s32.totalorder %s36, 0
      %p238 = por %p236, %p237
      %s240 = sadd.s32 %s239, 1
      %p243 = scmp.eq.s32.totalorder %s30, 1
      %p244 = scmp.ne.s32.totalorder %s239, %s241
      %p245 = scmp.eq.s32.totalorder %s30, 0
      %p246 = por %p244, %p245
      %p247 = scmp.ne.s32.totalorder %s239, %s241
      %p248 = scmp.eq.s32.totalorder %s35, 1
      %p249 = por %p247, %p248
      %p250 = scmp.ne.s32.totalorder %s241, %s242
      %p251 = scmp.eq.s32.totalorder %s35, 0
      %p252 = por %p250, %p251
      %p253 = scmp.ne.s32.totalorder %s241, %s242
      %p254 = scmp.eq.s32.totalorder %s36, 1
      %p255 = por %p253, %p254
      %p257 = scmp.ne.s32.totalorder %s242, %s256
      %p258 = scmp.eq.s32.totalorder %s36, 0
      %p259 = por %p257, %p258
      %s261 = sadd.s32 %s260, 1
      %p264 = scmp.eq.s32.totalorder %s30, 1
      %p265 = scmp.ne.s32.totalorder %s260, %s262
      %p266 = scmp.eq.s32.totalorder %s30, 0
      %p267 = por %p265, %p266
      %p268 = scmp.ne.s32.totalorder %s260, %s262
      %p269 = scmp.eq.s32.totalorder %s35, 1
      %p270 = por %p268, %p269
      %p271 = scmp.ne.s32.totalorder %s262, %s263
      %p272 = scmp.eq.s32.totalorder %s35, 0
      %p273 = por %p271, %p272
      %p274 = scmp.ne.s32.totalorder %s262, %s263
      %p275 = scmp.eq.s32.totalorder %s36, 1
      %p276 = por %p274, %p275
      %p278 = scmp.ne.s32.totalorder %s263, %s277
      %p279 = scmp.eq.s32.totalorder %s36, 0
      %p280 = por %p278, %p279
      %s282 = sadd.s32 %s281, 1
      %p285 = scmp.eq.s32.totalorder %s30, 1
      %p286 = scmp.ne.s32.totalorder %s281, %s283
      %p287 = scmp.eq.s32.totalorder %s30, 0
      %p288 = por %p286, %p287
      %p289 = scmp.ne.s32.totalorder %s281, %s283
      %p290 = scmp.eq.s32.totalorder %s35, 1
      %p291 = por %p289, %p290
      %p292 = scmp.ne.s32.totalorder %s283, %s284
      %p293 = scmp.eq.s32.totalorder %s35, 0
      %p294 = por %p292, %p293
      %p295 = scmp.ne.s32.totalorder %s283, %s284
      %p296 = scmp.eq.s32.totalorder %s36, 1
      %p297 = por %p295, %p296
      %p299 = scmp.ne.s32.totalorder %s284, %s298
      %p300 = scmp.eq.s32.totalorder %s36, 0
      %p301 = por %p299, %p300
      %s303 = sadd.s32 %s302, 1
      %p306 = scmp.eq.s32.totalorder %s30, 1
      %p307 = scmp.ne.s32.totalorder %s302, %s304
      %p308 = scmp.eq.s32.totalorder %s30, 0
      %p309 = por %p307, %p308
      %p310 = scmp.ne.s32.totalorder %s302, %s304
      %p311 = scmp.eq.s32.totalorder %s35, 1
      %p312 = por %p310, %p311
      %p313 = scmp.ne.s32.totalorder %s304, %s305
      %p314 = scmp.eq.s32.totalorder %s35, 0
      %p315 = por %p313, %p314
      %p316 = scmp.ne.s32.totalorder %s304, %s305
      %p317 = scmp.eq.s32.totalorder %s36, 1
      %p318 = por %p316, %p317
      %p320 = scmp.ne.s32.totalorder %s305, %s319
      %p321 = scmp.eq.s32.totalorder %s36, 0
      %p322 = por %p320, %p321
      %s323 = ssub.s32 %s37, %s56
      %s324 = ssub.s32 %s38, %s52
      %s325 = sor.u32 %s323, %s324
      %p326 = scmp.eq.s32.totalorder %s325, 0
      %s328 = sadd.s32 %s327, 1
      %s329 = scalar_select %p326, %s327, %s328
      %p332 = pneg %p326
      %p333 = scmp.eq.s32.totalorder %s30, 1
      %p334 = por %p332, %p333
      %p335 = scmp.ne.s32.totalorder %s327, %s330
      %p336 = scmp.eq.s32.totalorder %s30, 0
      %p337 = por %p335, %p336
      %p338 = scmp.ne.s32.totalorder %s327, %s330
      %p339 = scmp.eq.s32.totalorder %s35, 1
      %p340 = por %p338, %p339
      %p341 = scmp.ne.s32.totalorder %s330, %s331
      %p342 = scmp.eq.s32.totalorder %s35, 0
      %p343 = por %p341, %p342
      %p344 = scmp.ne.s32.totalorder %s330, %s331
      %p345 = scmp.eq.s32.totalorder %s36, 1
      %p346 = por %p344, %p345
      %p348 = scmp.ne.s32.totalorder %s331, %s347
      %p349 = scmp.eq.s32.totalorder %s36, 0
      %p350 = por %p348, %p349
      %p351 = scmp.le.s32.totalorder 1, %s30
      %p352 = scmp.lt.s32.totalorder %s30, 3
      %p353 = pnand %p351, %p352
      %p354 = pneg %p353
      // Predicated region
      $region9: #{attention_forward.1} parent=5 // pred_check
        _
      $region10: #{attention_forward.1} parent=5 // pred_check_branch
        %356 = sbr.rel (%p353) target = $region12
      $region11: #{attention_forward.1} parent=5 // pred_region
        %s357 = ssub.s32 %s30, 1
        // Predicated region
        $region13: #{attention_forward.1} parent=11 // pred_check
          %p358 = pneg %p126
        $region14: #{attention_forward.1} parent=11 // pred_check_branch
          %360 = sbr.rel (%p358) target = $region16
        $region15: #{attention_forward.1} parent=11 // pred_region
          %362 = vsyncadd [#allocation10], 0
          %s363 = sshll.u32 %s2, 4
          %s364 = int_to_ptr.hbm [resolvable:$true] %s363
          %s365 = sshll.u32 [#allocation11], 4
          %s366 = int_to_ptr.vmem [resolvable:$true] %s365
          %371 = dma.hbm_to_vmem [thread:$0]  %s364, 1024, %s366, [#allocation10], 64, 64, 4
        $region16: #{attention_forward.1} parent=11 // pred_fallthru
          _
        // Predicated region
        $region17: #{attention_forward.1} parent=11 // pred_check
          %p372 = pneg %p147
        $region18: #{attention_forward.1} parent=11 // pred_check_branch
          %374 = sbr.rel (%p372) target = $region20
        $region19: #{attention_forward.1} parent=11 // pred_region
          _
        $region20: #{attention_forward.1} parent=11 // pred_fallthru
          _
        // Predicated region
        $region21: #{attention_forward.1} parent=11 // pred_check
          %p375 = pneg %p168
        $region22: #{attention_forward.1} parent=11 // pred_check_branch
          %377 = sbr.rel (%p375) target = $region24
        $region23: #{attention_forward.1} parent=11 // pred_region
          %379 = vsyncadd [#allocation13], 0
          %s380 = sshll.u32 %s4, 4
          %s381 = int_to_ptr.hbm [resolvable:$true] %s380
          %s382 = sshll.u32 [#allocation12], 4
          %s383 = int_to_ptr.vmem [resolvable:$true] %s382
          %388 = dma.hbm_to_vmem [thread:$0]  %s381, 512, %s383, [#allocation13], 64, 64, 4
        $region24: #{attention_forward.1} parent=11 // pred_fallthru
          _
        // Predicated region
        $region25: #{attention_forward.1} parent=11 // pred_check
          %p389 = pneg %p189
        $region26: #{attention_forward.1} parent=11 // pred_check_branch
          %391 = sbr.rel (%p389) target = $region28
        $region27: #{attention_forward.1} parent=11 // pred_region
          _
        $region28: #{attention_forward.1} parent=11 // pred_fallthru
          _
        // Predicated region
        $region29: #{attention_forward.1} parent=11 // pred_check
          %p392 = pneg %p210
        $region30: #{attention_forward.1} parent=11 // pred_check_branch
          %394 = sbr.rel (%p392) target = $region32
        $region31: #{attention_forward.1} parent=11 // pred_region
          %396 = vsyncadd [#allocation13], 0
          %s397 = sshll.u32 %s6, 4
          %s398 = int_to_ptr.hbm [resolvable:$true] %s397
          %s399 = sshll.u32 [#allocation14], 4
          %s400 = int_to_ptr.vmem [resolvable:$true] %s399
          %405 = dma.hbm_to_vmem [thread:$0]  %s398, 512, %s400, [#allocation13], 64, 64, 4
        $region32: #{attention_forward.1} parent=11 // pred_fallthru
          _
        // Predicated region
        $region33: #{attention_forward.1} parent=11 // pred_check
          %p406 = pneg %p231
        $region34: #{attention_forward.1} parent=11 // pred_check_branch
          %408 = sbr.rel (%p406) target = $region36
        $region35: #{attention_forward.1} parent=11 // pred_region
          _
        $region36: #{attention_forward.1} parent=11 // pred_fallthru
          _
        // Predicated region
        $region37: #{attention_forward.1} parent=11 // pred_check
          %p409 = pneg %p252
        $region38: #{attention_forward.1} parent=11 // pred_check_branch
          %411 = sbr.rel (%p409) target = $region40
        $region39: #{attention_forward.1} parent=11 // pred_region
          %413 = vsyncadd [#allocation16], 0
          %s414 = sshll.u32 %s8, 4
          %s415 = int_to_ptr.hbm [resolvable:$true] %s414
          %s416 = sshll.u32 [#allocation15], 4
          %s417 = int_to_ptr.vmem [resolvable:$true] %s416
          %422 = dma.hbm_to_vmem [thread:$0]  %s415, 1024, %s417, [#allocation16], 64, 64, 4
        $region40: #{attention_forward.1} parent=11 // pred_fallthru
          _
        // Predicated region
        $region41: #{attention_forward.1} parent=11 // pred_check
          %p423 = pneg %p273
        $region42: #{attention_forward.1} parent=11 // pred_check_branch
          %425 = sbr.rel (%p423) target = $region44
        $region43: #{attention_forward.1} parent=11 // pred_region
          %427 = vsyncadd [#allocation16], 0
          %s429 = sshll.u32 %s9, 4
          %s430 = int_to_ptr.hbm [resolvable:$true] %s429
          %s431 = sshll.u32 [#allocation17], 4
          %s432 = int_to_ptr.vmem [resolvable:$true] %s431
          %434 = dma.hbm_to_vmem [thread:$0]  %s430, 16, %s432, [#allocation16]
        $region44: #{attention_forward.1} parent=11 // pred_fallthru
          _
        // Predicated region
        $region45: #{attention_forward.1} parent=11 // pred_check
          %p435 = pneg %p294
        $region46: #{attention_forward.1} parent=11 // pred_check_branch
          %437 = sbr.rel (%p435) target = $region48
        $region47: #{attention_forward.1} parent=11 // pred_region
          _
        $region48: #{attention_forward.1} parent=11 // pred_fallthru
          _
        // Predicated region
        $region49: #{attention_forward.1} parent=11 // pred_check
          %p438 = pneg %p315
        $region50: #{attention_forward.1} parent=11 // pred_check_branch
          %440 = sbr.rel (%p438) target = $region52
        $region51: #{attention_forward.1} parent=11 // pred_region
          %442 = vsyncadd [#allocation19], 0
          %s444 = sshll.u32 %s11, 4
          %s445 = int_to_ptr.hbm [resolvable:$true] %s444
          %s446 = sshll.u32 [#allocation18], 4
          %s447 = int_to_ptr.vmem [resolvable:$true] %s446
          %449 = dma.hbm_to_vmem [thread:$0]  %s445, 16, %s447, [#allocation19]
        $region52: #{attention_forward.1} parent=11 // pred_fallthru
          _
      $region12: #{attention_forward.1} parent=5 // pred_fallthru
        _
      %p450 = scmp.lt.s32.totalorder %s30, 2
      // Predicated region
      $region53: #{attention_forward.1} parent=5 // pred_check
        %p451 = pneg %p450
      $region54: #{attention_forward.1} parent=5 // pred_check_branch
        %453 = sbr.rel (%p451) target = $region56
      $region55: #{attention_forward.1} parent=5 // pred_region
        // Predicated region
        $region57: #{attention_forward.1} parent=55 // pred_check
          %p454 = pneg %p71
        $region58: #{attention_forward.1} parent=55 // pred_check_branch
          %456 = sbr.rel (%p454) target = $region60
        $region59: #{attention_forward.1} parent=55 // pred_region
          %s457 = sand.u32 %s61, 1
          %s458 = scalar_lea.sflag [#allocation7], %s457
          %s459 = sand.u32 %s61, 1
          %s460 = smul.addr %s459, 8
          %s461 = scalar_lea.vmem [#allocation6], %s460
          %463 = vsyncadd %s458, 0
          %s464 = sadd.s32 %s38, %s37
          %s465 = smul.addr %s464, 8
          %s466 = scalar_lea.hbm %s0, %s465
          %s468 = sshll.u32 %s466, 4
          %s469 = int_to_ptr.hbm [resolvable:$true] %s468
          %s470 = sshll.u32 %s461, 4
          %s471 = int_to_ptr.vmem [resolvable:$true] %s470
          %473 = dma.hbm_to_vmem [thread:$0]  %s469, 128, %s471, %s458
        $region60: #{attention_forward.1} parent=55 // pred_fallthru
          _
        // Predicated region
        $region61: #{attention_forward.1} parent=55 // pred_check
          %p474 = pneg %p99
        $region62: #{attention_forward.1} parent=55 // pred_check_branch
          %476 = sbr.rel (%p474) target = $region64
        $region63: #{attention_forward.1} parent=55 // pred_region
          %s477 = sand.u32 %s30, 1
          %s478 = scalar_lea.sflag [#allocation10], %s477
          %s479 = sand.u32 %s89, 1
          %s480 = smul.addr %s479, 8
          %s481 = scalar_lea.vmem [#allocation9], %s480
          %483 = vsyncadd %s478, 0
          %s484 = sadd.s32 %s39, %s37
          %s485 = smul.addr %s484, 8
          %s486 = scalar_lea.hbm %s1, %s485
          %s488 = sshll.u32 %s486, 4
          %s489 = int_to_ptr.hbm [resolvable:$true] %s488
          %s490 = sshll.u32 %s481, 4
          %s491 = int_to_ptr.vmem [resolvable:$true] %s490
          %493 = dma.hbm_to_vmem [thread:$0]  %s489, 128, %s491, %s478
        $region64: #{attention_forward.1} parent=55 // pred_fallthru
          _
      $region56: #{attention_forward.1} parent=5 // pred_fallthru
        _
      %p494 = scmp.le.s32.totalorder 1, %s30
      %p495 = scmp.lt.s32.totalorder %s30, 3
      %p496 = pnand %p494, %p495
      %p497 = pneg %p496
      // Predicated region
      $region65: #{attention_forward.1} parent=5 // pred_check
        _
      $region66: #{attention_forward.1} parent=5 // pred_check_branch
        %499 = sbr.rel (%p496) target = $region68
      $region67: #{attention_forward.1} parent=5 // pred_region
        %s500 = ssub.s32 %s30, 1
        %s501 = sand.u32 %s64, 1
        %s502 = scalar_lea.sflag [#allocation7], %s501
        %s503 = sand.u32 %s64, 1
        %s504 = smul.addr %s503, 8
        %s505 = scalar_lea.vmem [#allocation6], %s504
        // Predicated region
        $region69: #{attention_forward.1} parent=67 // pred_check
          %p506 = pneg %p77
        $region70: #{attention_forward.1} parent=67 // pred_check_branch
          %508 = sbr.rel (%p506) target = $region72
        $region71: #{attention_forward.1} parent=67 // pred_region
          %510 = dma.done %s502, 128
        $region72: #{attention_forward.1} parent=67 // pred_fallthru
          _
        %s511 = sand.u32 %s35, 1
        %s512 = scalar_lea.sflag [#allocation10], %s511
        %s513 = sand.u32 %s92, 1
        %s514 = smul.addr %s513, 8
        %s515 = scalar_lea.vmem [#allocation9], %s514
        // Predicated region
        $region73: #{attention_forward.1} parent=67 // pred_check
          %p516 = pneg %p105
        $region74: #{attention_forward.1} parent=67 // pred_check_branch
          %518 = sbr.rel (%p516) target = $region76
        $region75: #{attention_forward.1} parent=67 // pred_region
          %520 = dma.done %s512, 128
        $region76: #{attention_forward.1} parent=67 // pred_fallthru
          _
        // Predicated region
        $region77: #{attention_forward.1} parent=67 // pred_check
          %p521 = pneg %p126
        $region78: #{attention_forward.1} parent=67 // pred_check_branch
          %523 = sbr.rel (%p521) target = $region80
        $region79: #{attention_forward.1} parent=67 // pred_region
          %525 = dma.done [#allocation10], 1024
        $region80: #{attention_forward.1} parent=67 // pred_fallthru
          _
        // Predicated region
        $region81: #{attention_forward.1} parent=67 // pred_check
          %p526 = pneg %p168
        $region82: #{attention_forward.1} parent=67 // pred_check_branch
          %528 = sbr.rel (%p526) target = $region84
        $region83: #{attention_forward.1} parent=67 // pred_region
          %530 = dma.done [#allocation13], 512
        $region84: #{attention_forward.1} parent=67 // pred_fallthru
          _
        // Predicated region
        $region85: #{attention_forward.1} parent=67 // pred_check
          %p531 = pneg %p210
        $region86: #{attention_forward.1} parent=67 // pred_check_branch
          %533 = sbr.rel (%p531) target = $region88
        $region87: #{attention_forward.1} parent=67 // pred_region
          %535 = dma.done [#allocation13], 512
        $region88: #{attention_forward.1} parent=67 // pred_fallthru
          _
        // Predicated region
        $region89: #{attention_forward.1} parent=67 // pred_check
          %p536 = pneg %p252
        $region90: #{attention_forward.1} parent=67 // pred_check_branch
          %538 = sbr.rel (%p536) target = $region92
        $region91: #{attention_forward.1} parent=67 // pred_region
          %540 = dma.done [#allocation16], 1024
        $region92: #{attention_forward.1} parent=67 // pred_fallthru
          _
        // Predicated region
        $region93: #{attention_forward.1} parent=67 // pred_check
          %p541 = pneg %p273
        $region94: #{attention_forward.1} parent=67 // pred_check_branch
          %543 = sbr.rel (%p541) target = $region96
        $region95: #{attention_forward.1} parent=67 // pred_region
          %545 = dma.done [#allocation16], 16
        $region96: #{attention_forward.1} parent=67 // pred_fallthru
          _
        // Predicated region
        $region97: #{attention_forward.1} parent=67 // pred_check
          %p546 = pneg %p315
        $region98: #{attention_forward.1} parent=67 // pred_check_branch
          %548 = sbr.rel (%p546) target = $region100
        $region99: #{attention_forward.1} parent=67 // pred_region
          %550 = dma.done [#allocation19], 16
        $region100: #{attention_forward.1} parent=67 // pred_fallthru
          _
        %s551 = sand.u32 %s64, 1
        %s552 = scalar_lea.sflag [#allocation7], %s551
        %s553 = sand.u32 %s64, 1
        %s554 = smul.addr %s553, 8
        %s555 = scalar_lea.vmem [#allocation6], %s554
        %p556 = pneg %p77
        %p557 = pneg %p74
        %s558 = sand.u32 %s35, 1
        %s559 = scalar_lea.sflag [#allocation10], %s558
        %s560 = sand.u32 %s92, 1
        %s561 = smul.addr %s560, 8
        %s562 = scalar_lea.vmem [#allocation9], %s561
        %p563 = pneg %p105
        %p564 = pneg %p102
        %p565 = pneg %p126
        %p566 = pneg %p123
        %p567 = pneg %p147
        %p568 = pneg %p144
        %p569 = pneg %p168
        %p570 = pneg %p165
        %p571 = pneg %p189
        %p572 = pneg %p186
        %p573 = pneg %p210
        %p574 = pneg %p207
        %p575 = pneg %p231
        %p576 = pneg %p228
        %p577 = pneg %p252
        %p578 = pneg %p249
        %p579 = pneg %p273
        %p580 = pneg %p270
        %p581 = pneg %p294
        %p582 = pneg %p291
        %p583 = pneg %p315
        %p584 = pneg %p312
        %p585 = pneg %p343
        %p586 = pneg %p340
        %s587 = sand.u32 %s330, 1
        %s588 = scalar_lea.sflag [#allocation8], %s587
        %s589 = sand.u32 %s330, 1
        %s590 = smul.addr %s589, 8
        %s591 = scalar_lea.vmem [#allocation20], %s590
        %p593 = scmp.eq.s32.totalorder %s42, 0
        // Predicated region
        $region101: #{attention_forward.1} parent=67 // pred_check
          %p594 = pneg %p593
        $region102: #{attention_forward.1} parent=67 // pred_check_branch
          %596 = sbr.rel (%p594) target = $region104
        $region103: #{attention_forward.1} parent=67 // pred_region
          %v597 = vld [vmem:[%s505] sm:$0xff]
          %598 = vadd.xlane.f32.xlu0 %v597
          %v599 = vpop.xlane.xlu0 %598
          %v600 = vrcp.pop 128.0
          %v601 = vmul.f32 128.0, %v600
          %v602 = vsub.f32 1.0, %v601
          %v603 = vmul.f32 %v600, %v602
          %v604 = vadd.f32 %v600, %v603
          %vm605 = vweird.f32 %v600
          %v606 = vsel %vm605, %v600, %v604
          %v607 = vmul.f32 %v599, %v606
          %v608 = vsub.f32 %v597, %v607
          %v609 = vmul.f32 %v608, %v608
          %610 = vadd.xlane.f32.xlu0 %v609
          %v611 = vpop.xlane.xlu0 %610
          %v612 = vmul.f32 %v611, %v606
          %v613 = vadd.f32 %v612, 1e-05
          %v614 = vrsqrt.pop %v613
          %v615 = vmul.f32 %v614, %v613
          %v616 = vmul.f32 %v615, %v614
          %v617 = vmul.f32 0.5, %v616
          %v618 = vsub.f32 1.5, %v617
          %v619 = vmul.f32 %v614, %v618
          %vm620 = vweird.f32 %v613
          %vm621 = vweird.f32 %v614
          %vm622 = vmor %vm620, %vm621
          %v623 = vsel %vm622, %v614, %v619
          %v624 = vmul.f32 %v608, %v623
          %v625 = vld [vmem:[%s10] sm:$0x1]
          %v627 = vperm.slane %v625, 0
          %v629 = vmul.f32 %v624, %v627
          %v630 = vld [vmem:[#allocation18] sm:$0x1]
          %v632 = vperm.slane %v630, 0
          %v634 = vadd.f32 %v629, %v632
          %v635 = vpack.c.bf16 %v634, %v634
          %v636 = vld [vmem:[#allocation11] sm:$0xf]
          %v637 = vld [vmem:[#allocation11 + $0x4] sm:$0xf]
          %v638 = vld [vmem:[#allocation11 + $0x8] sm:$0xf]
          %v639 = vld [vmem:[#allocation11 + $0xc] sm:$0xf]
          %v640 = vld [vmem:[#allocation11 + $0x10] sm:$0xf]
          %v641 = vld [vmem:[#allocation11 + $0x14] sm:$0xf]
          %v642 = vld [vmem:[#allocation11 + $0x18] sm:$0xf]
          %v643 = vld [vmem:[#allocation11 + $0x1c] sm:$0xf]
          %v644 = vld [vmem:[#allocation11 + $0x20] sm:$0xf]
          %v645 = vld [vmem:[#allocation11 + $0x24] sm:$0xf]
          %v646 = vld [vmem:[#allocation11 + $0x28] sm:$0xf]
          %v647 = vld [vmem:[#allocation11 + $0x2c] sm:$0xf]
          %v648 = vld [vmem:[#allocation11 + $0x30] sm:$0xf]
          %v649 = vld [vmem:[#allocation11 + $0x34] sm:$0xf]
          %v650 = vld [vmem:[#allocation11 + $0x38] sm:$0xf]
          %v651 = vld [vmem:[#allocation11 + $0x3c] sm:$0xf]
          %v652 = vld [vmem:[%s3] sm:$0x1]
          %v654 = vperm.slane %v652, 0
          %v672 = vunpack.c.l.b16 %v636
          %v673 = vunpack.c.l.b16 %v637
          %v674 = vunpack.c.l.b16 %v638
          %v675 = vunpack.c.l.b16 %v639
          %v676 = vunpack.c.l.b16 %v640
          %v677 = vunpack.c.l.b16 %v641
          %v678 = vunpack.c.l.b16 %v642
          %v679 = vunpack.c.l.b16 %v643
          %v680 = vunpack.c.l.b16 %v644
          %v681 = vunpack.c.l.b16 %v645
          %v682 = vunpack.c.l.b16 %v646
          %v683 = vunpack.c.l.b16 %v647
          %v684 = vunpack.c.l.b16 %v648
          %v685 = vunpack.c.l.b16 %v649
          %v686 = vunpack.c.l.b16 %v650
          %v687 = vunpack.c.l.b16 %v651
          %v688 = vpack.c.b16 %v673, %v672
          %v689 = vpack.c.b16 %v675, %v674
          %v690 = vpack.c.b16 %v677, %v676
          %v691 = vpack.c.b16 %v679, %v678
          %v692 = vpack.c.b16 %v681, %v680
          %v693 = vpack.c.b16 %v683, %v682
          %v694 = vpack.c.b16 %v685, %v684
          %v695 = vpack.c.b16 %v687, %v686
          %704 = vmatpush.bf16.msra.mxu0 %v695
          %705 = vmatpush.bf16.msra.mxu0 %v694
          %706 = vmatpush.bf16.msra.mxu0 %v693
          %707 = vmatpush.bf16.msra.mxu0 %v692
          %708 = vmatpush.bf16.msra.mxu0 %v691
          %709 = vmatpush.bf16.msra.mxu0 %v690
          %710 = vmatpush.bf16.msra.mxu0 %v689
          %711 = vmatpush.bf16.msra.mxu0 %v688
          %712 = vmatmul.bf16.gmra.mxu0 %v635
          %v713 = vpop.f32.mrf.mxu0
          %v714 = vadd.f32 %v654, %v713
          %v715 = vpop.f32.mrf.mxu0
          %716 = vdwg.mxu0
          %v717 = vpack.c.bf16 %v714, %v714
          %718 = vst [vmem:[#allocation2] sm:$0xf] %v717
          %vm719 = vcmask 7168
          %720 = vst.msk [vmem:[#allocation3] sm:$0xff] %vm719, -inf
          %721 = vst.msk [vmem:[#allocation3 + $0x8] sm:$0xff] %vm719, -inf
          %722 = vst.msk [vmem:[#allocation3 + $0x10] sm:$0xff] %vm719, -inf
          %723 = vst.msk [vmem:[#allocation3 + $0x18] sm:$0xff] %vm719, -inf
          %724 = vst.msk [vmem:[#allocation3 + $0x20] sm:$0xff] %vm719, -inf
          %725 = vst.msk [vmem:[#allocation3 + $0x28] sm:$0xff] %vm719, -inf
          %726 = vst.msk [vmem:[#allocation3 + $0x30] sm:$0xff] %vm719, -inf
          %727 = vst.msk [vmem:[#allocation3 + $0x38] sm:$0xff] %vm719, -inf
          %728 = vst.msk [vmem:[#allocation4] sm:$0xff] %vm719, 0.0
          %729 = vst.msk [vmem:[#allocation4 + $0x8] sm:$0xff] %vm719, 0.0
          %730 = vst.msk [vmem:[#allocation4 + $0x10] sm:$0xff] %vm719, 0.0
          %731 = vst.msk [vmem:[#allocation4 + $0x18] sm:$0xff] %vm719, 0.0
          %732 = vst.msk [vmem:[#allocation4 + $0x20] sm:$0xff] %vm719, 0.0
          %733 = vst.msk [vmem:[#allocation4 + $0x28] sm:$0xff] %vm719, 0.0
          %734 = vst.msk [vmem:[#allocation4 + $0x30] sm:$0xff] %vm719, 0.0
          %735 = vst.msk [vmem:[#allocation4 + $0x38] sm:$0xff] %vm719, 0.0
          %vm736 = vcmask 130048
          %737 = vst.msk [vmem:[#allocation5] sm:$0xff] %vm736, 0.0
          %738 = vst.msk [vmem:[#allocation5 + $0x8] sm:$0xff] %vm736, 0.0
          %739 = vst.msk [vmem:[#allocation5 + $0x10] sm:$0xff] %vm736, 0.0
          %740 = vst.msk [vmem:[#allocation5 + $0x18] sm:$0xff] %vm736, 0.0
          %741 = vst.msk [vmem:[#allocation5 + $0x20] sm:$0xff] %vm736, 0.0
          %742 = vst.msk [vmem:[#allocation5 + $0x28] sm:$0xff] %vm736, 0.0
          %743 = vst.msk [vmem:[#allocation5 + $0x30] sm:$0xff] %vm736, 0.0
          %744 = vst.msk [vmem:[#allocation5 + $0x38] sm:$0xff] %vm736, 0.0
        $region104: #{attention_forward.1} parent=67 // pred_fallthru
          _
        %v745 = vld [vmem:[%s515] sm:$0xff]
        %v746 = vpack.c.bf16 %v745, %v745
        %v747 = vld [vmem:[#allocation12] sm:$0xf]
        %v748 = vld [vmem:[#allocation12 + $0x4] sm:$0xf]
        %v749 = vld [vmem:[#allocation12 + $0x8] sm:$0xf]
        %v750 = vld [vmem:[#allocation12 + $0xc] sm:$0xf]
        %v751 = vld [vmem:[#allocation12 + $0x10] sm:$0xf]
        %v752 = vld [vmem:[#allocation12 + $0x14] sm:$0xf]
        %v753 = vld [vmem:[#allocation12 + $0x18] sm:$0xf]
        %v754 = vld [vmem:[#allocation12 + $0x1c] sm:$0xf]
        %v755 = vld [vmem:[%s5] sm:$0x1]
        %v757 = vperm.slane %v755, 0
        %v767 = vunpack.c.l.b16 %v747
        %v768 = vunpack.c.l.b16 %v748
        %v769 = vunpack.c.l.b16 %v749
        %v770 = vunpack.c.l.b16 %v750
        %v771 = vunpack.c.l.b16 %v751
        %v772 = vunpack.c.l.b16 %v752
        %v773 = vunpack.c.l.b16 %v753
        %v774 = vunpack.c.l.b16 %v754
        %v775 = vpack.c.b16 %v768, %v767
        %v776 = vpack.c.b16 %v770, %v769
        %v777 = vpack.c.b16 %v772, %v771
        %v778 = vpack.c.b16 %v774, %v773
        %vm783 = vcmask 523264
        %v785 = vsel %vm783, %v746, 0
        %787 = vmatpush.bf16.msra.mxu0 0
        %788 = vmatpush.bf16.msra.mxu0 0
        %789 = vmatpush.bf16.msra.mxu0 0
        %790 = vmatpush.bf16.msra.mxu0 0
        %791 = vmatpush.bf16.msra.mxu0 %v778
        %792 = vmatpush.bf16.msra.mxu0 %v777
        %793 = vmatpush.bf16.msra.mxu0 %v776
        %794 = vmatpush.bf16.msra.mxu0 %v775
        %795 = vmatmul.bf16.gmra.mxu0 %v785
        %v796 = vpop.f32.mrf.mxu0
        %v797 = vadd.f32 %v757, %v796
        %v798 = vpop.f32.mrf.mxu0
        %799 = vdwg.mxu0
        %v800 = vld [vmem:[#allocation14] sm:$0xf]
        %v801 = vld [vmem:[#allocation14 + $0x4] sm:$0xf]
        %v802 = vld [vmem:[#allocation14 + $0x8] sm:$0xf]
        %v803 = vld [vmem:[#allocation14 + $0xc] sm:$0xf]
        %v804 = vld [vmem:[#allocation14 + $0x10] sm:$0xf]
        %v805 = vld [vmem:[#allocation14 + $0x14] sm:$0xf]
        %v806 = vld [vmem:[#allocation14 + $0x18] sm:$0xf]
        %v807 = vld [vmem:[#allocation14 + $0x1c] sm:$0xf]
        %v808 = vld [vmem:[%s7] sm:$0x1]
        %v810 = vperm.slane %v808, 0
        %v820 = vunpack.c.l.b16 %v800
        %v821 = vunpack.c.l.b16 %v801
        %v822 = vunpack.c.l.b16 %v802
        %v823 = vunpack.c.l.b16 %v803
        %v824 = vunpack.c.l.b16 %v804
        %v825 = vunpack.c.l.b16 %v805
        %v826 = vunpack.c.l.b16 %v806
        %v827 = vunpack.c.l.b16 %v807
        %v828 = vpack.c.b16 %v821, %v820
        %v829 = vpack.c.b16 %v823, %v822
        %v830 = vpack.c.b16 %v825, %v824
        %v831 = vpack.c.b16 %v827, %v826
        %836 = vmatpush.bf16.msra.mxu0 0
        %837 = vmatpush.bf16.msra.mxu0 0
        %838 = vmatpush.bf16.msra.mxu0 0
        %839 = vmatpush.bf16.msra.mxu0 0
        %840 = vmatpush.bf16.msra.mxu0 %v831
        %841 = vmatpush.bf16.msra.mxu0 %v830
        %842 = vmatpush.bf16.msra.mxu0 %v829
        %843 = vmatpush.bf16.msra.mxu0 %v828
        %844 = vmatmul.bf16.gmra.mxu0 %v785
        %v845 = vpop.f32.mrf.mxu0
        %v846 = vadd.f32 %v810, %v845
        %v847 = vpop.f32.mrf.mxu0
        %848 = vdwg.mxu0
        %v849 = vpack.c.bf16 %v797, %v797
        %v850 = vpack.c.bf16 %v846, %v846
        %v851 = vld [vmem:[#allocation2] sm:$0xf]
        %853 = vrot.lane.b32.xlu0 %v851, 112
        %v854 = vpop.permute.xlu0 %853
        %855 = vrot.lane.b32.xlu0 %v851, 96
        %v856 = vpop.permute.xlu0 %855
        %857 = vrot.lane.b32.xlu0 %v851, 80
        %v858 = vpop.permute.xlu0 %857
        %859 = vrot.lane.b32.xlu0 %v851, 64
        %v860 = vpop.permute.xlu0 %859
        %861 = vrot.lane.b32.xlu0 %v851, 48
        %v862 = vpop.permute.xlu0 %861
        %863 = vrot.lane.b32.xlu0 %v851, 32
        %v864 = vpop.permute.xlu0 %863
        %865 = vrot.lane.b32.xlu0 %v851, 16
        %v866 = vpop.permute.xlu0 %865
        %868 = vrot.lane.b32.xlu0 %v849, 112
        %v869 = vpop.permute.xlu0 %868
        %870 = vrot.lane.b32.xlu0 %v849, 96
        %v871 = vpop.permute.xlu0 %870
        %872 = vrot.lane.b32.xlu0 %v849, 80
        %v873 = vpop.permute.xlu0 %872
        %874 = vrot.lane.b32.xlu0 %v849, 64
        %v875 = vpop.permute.xlu0 %874
        %876 = vrot.lane.b32.xlu0 %v849, 48
        %v877 = vpop.permute.xlu0 %876
        %878 = vrot.lane.b32.xlu0 %v849, 32
        %v879 = vpop.permute.xlu0 %878
        %880 = vrot.lane.b32.xlu0 %v849, 16
        %v881 = vpop.permute.xlu0 %880
        %883 = vrot.lane.b32.xlu0 %v850, 112
        %v884 = vpop.permute.xlu0 %883
        %885 = vrot.lane.b32.xlu0 %v850, 96
        %v886 = vpop.permute.xlu0 %885
        %887 = vrot.lane.b32.xlu0 %v850, 80
        %v888 = vpop.permute.xlu0 %887
        %889 = vrot.lane.b32.xlu0 %v850, 64
        %v890 = vpop.permute.xlu0 %889
        %891 = vrot.lane.b32.xlu0 %v850, 48
        %v892 = vpop.permute.xlu0 %891
        %893 = vrot.lane.b32.xlu0 %v850, 32
        %v894 = vpop.permute.xlu0 %893
        %895 = vrot.lane.b32.xlu0 %v850, 16
        %v896 = vpop.permute.xlu0 %895
        %vm897 = vcmask 130048
        %v899 = vsel %vm897, %v851, 0
        %v902 = vsel %vm897, %v849, 0
        %904 = vmatpush.bf16.xpose.msra.mxu0 0
        %905 = vmatpush.bf16.xpose.msra.mxu0 0
        %906 = vmatpush.bf16.xpose.msra.mxu0 0
        %907 = vmatpush.bf16.xpose.msra.mxu0 0
        %908 = vmatpush.bf16.xpose.msra.mxu0 0
        %909 = vmatpush.bf16.xpose.msra.mxu0 0
        %910 = vmatpush.bf16.xpose.msra.mxu0 0
        %911 = vmatpush.bf16.xpose.msra.mxu0 %v902
        %912 = vmatmul.bf16.gmra.mxu0 %v899
        %v913 = vpop.f32.mrf.mxu0
        %v914 = vadd.f32 0.0, %v913
        %v915 = vpop.f32.mrf.mxu0
        %916 = vdwg.mxu0
        %v918 = vsel %vm897, %v854, 0
        %v921 = vsel %vm897, %v869, 0
        %923 = vmatpush.bf16.xpose.msra.mxu0 0
        %924 = vmatpush.bf16.xpose.msra.mxu0 0
        %925 = vmatpush.bf16.xpose.msra.mxu0 0
        %926 = vmatpush.bf16.xpose.msra.mxu0 0
        %927 = vmatpush.bf16.xpose.msra.mxu0 0
        %928 = vmatpush.bf16.xpose.msra.mxu0 0
        %929 = vmatpush.bf16.xpose.msra.mxu0 0
        %930 = vmatpush.bf16.xpose.msra.mxu0 %v921
        %931 = vmatmul.bf16.gmra.mxu0 %v918
        %v932 = vpop.f32.mrf.mxu0
        %v933 = vadd.f32 0.0, %v932
        %v934 = vpop.f32.mrf.mxu0
        %935 = vdwg.mxu0
        %v937 = vsel %vm897, %v856, 0
        %v940 = vsel %vm897, %v871, 0
        %942 = vmatpush.bf16.xpose.msra.mxu0 0
        %943 = vmatpush.bf16.xpose.msra.mxu0 0
        %944 = vmatpush.bf16.xpose.msra.mxu0 0
        %945 = vmatpush.bf16.xpose.msra.mxu0 0
        %946 = vmatpush.bf16.xpose.msra.mxu0 0
        %947 = vmatpush.bf16.xpose.msra.mxu0 0
        %948 = vmatpush.bf16.xpose.msra.mxu0 0
        %949 = vmatpush.bf16.xpose.msra.mxu0 %v940
        %950 = vmatmul.bf16.gmra.mxu0 %v937
        %v951 = vpop.f32.mrf.mxu0
        %v952 = vadd.f32 0.0, %v951
        %v953 = vpop.f32.mrf.mxu0
        %954 = vdwg.mxu0
        %v956 = vsel %vm897, %v858, 0
        %v959 = vsel %vm897, %v873, 0
        %961 = vmatpush.bf16.xpose.msra.mxu0 0
        %962 = vmatpush.bf16.xpose.msra.mxu0 0
        %963 = vmatpush.bf16.xpose.msra.mxu0 0
        %964 = vmatpush.bf16.xpose.msra.mxu0 0
        %965 = vmatpush.bf16.xpose.msra.mxu0 0
        %966 = vmatpush.bf16.xpose.msra.mxu0 0
        %967 = vmatpush.bf16.xpose.msra.mxu0 0
        %968 = vmatpush.bf16.xpose.msra.mxu0 %v959
        %969 = vmatmul.bf16.gmra.mxu0 %v956
        %v970 = vpop.f32.mrf.mxu0
        %v971 = vadd.f32 0.0, %v970
        %v972 = vpop.f32.mrf.mxu0
        %973 = vdwg.mxu0
        %v975 = vsel %vm897, %v860, 0
        %v978 = vsel %vm897, %v875, 0
        %980 = vmatpush.bf16.xpose.msra.mxu0 0
        %981 = vmatpush.bf16.xpose.msra.mxu0 0
        %982 = vmatpush.bf16.xpose.msra.mxu0 0
        %983 = vmatpush.bf16.xpose.msra.mxu0 0
        %984 = vmatpush.bf16.xpose.msra.mxu0 0
        %985 = vmatpush.bf16.xpose.msra.mxu0 0
        %986 = vmatpush.bf16.xpose.msra.mxu0 0
        %987 = vmatpush.bf16.xpose.msra.mxu0 %v978
        %988 = vmatmul.bf16.gmra.mxu0 %v975
        %v989 = vpop.f32.mrf.mxu0
        %v990 = vadd.f32 0.0, %v989
        %v991 = vpop.f32.mrf.mxu0
        %992 = vdwg.mxu0
        %v994 = vsel %vm897, %v862, 0
        %v997 = vsel %vm897, %v877, 0
        %999 = vmatpush.bf16.xpose.msra.mxu0 0
        %1000 = vmatpush.bf16.xpose.msra.mxu0 0
        %1001 = vmatpush.bf16.xpose.msra.mxu0 0
        %1002 = vmatpush.bf16.xpose.msra.mxu0 0
        %1003 = vmatpush.bf16.xpose.msra.mxu0 0
        %1004 = vmatpush.bf16.xpose.msra.mxu0 0
        %1005 = vmatpush.bf16.xpose.msra.mxu0 0
        %1006 = vmatpush.bf16.xpose.msra.mxu0 %v997
        %1007 = vmatmul.bf16.gmra.mxu0 %v994
        %v1008 = vpop.f32.mrf.mxu0
        %v1009 = vadd.f32 0.0, %v1008
        %v1010 = vpop.f32.mrf.mxu0
        %1011 = vdwg.mxu0
        %v1013 = vsel %vm897, %v864, 0
        %v1016 = vsel %vm897, %v879, 0
        %1018 = vmatpush.bf16.xpose.msra.mxu0 0
        %1019 = vmatpush.bf16.xpose.msra.mxu0 0
        %1020 = vmatpush.bf16.xpose.msra.mxu0 0
        %1021 = vmatpush.bf16.xpose.msra.mxu0 0
        %1022 = vmatpush.bf16.xpose.msra.mxu0 0
        %1023 = vmatpush.bf16.xpose.msra.mxu0 0
        %1024 = vmatpush.bf16.xpose.msra.mxu0 0
        %1025 = vmatpush.bf16.xpose.msra.mxu0 %v1016
        %1026 = vmatmul.bf16.gmra.mxu0 %v1013
        %v1027 = vpop.f32.mrf.mxu0
        %v1028 = vadd.f32 0.0, %v1027
        %v1029 = vpop.f32.mrf.mxu0
        %1030 = vdwg.mxu0
        %v1032 = vsel %vm897, %v866, 0
        %v1035 = vsel %vm897, %v881, 0
        %1037 = vmatpush.bf16.xpose.msra.mxu0 0
        %1038 = vmatpush.bf16.xpose.msra.mxu0 0
        %1039 = vmatpush.bf16.xpose.msra.mxu0 0
        %1040 = vmatpush.bf16.xpose.msra.mxu0 0
        %1041 = vmatpush.bf16.xpose.msra.mxu0 0
        %1042 = vmatpush.bf16.xpose.msra.mxu0 0
        %1043 = vmatpush.bf16.xpose.msra.mxu0 0
        %1044 = vmatpush.bf16.xpose.msra.mxu0 %v1035
        %1045 = vmatmul.bf16.gmra.mxu0 %v1032
        %v1046 = vpop.f32.mrf.mxu0
        %v1047 = vadd.f32 0.0, %v1046
        %v1048 = vpop.f32.mrf.mxu0
        %1049 = vdwg.mxu0
        %v1050 = vld [vmem:[#allocation3] sm:$0xff]
        %v1051 = vld [vmem:[#allocation3 + $0x8] sm:$0xff]
        %v1052 = vld [vmem:[#allocation3 + $0x10] sm:$0xff]
        %v1053 = vld [vmem:[#allocation3 + $0x18] sm:$0xff]
        %v1054 = vld [vmem:[#allocation3 + $0x20] sm:$0xff]
        %v1055 = vld [vmem:[#allocation3 + $0x28] sm:$0xff]
        %v1056 = vld [vmem:[#allocation3 + $0x30] sm:$0xff]
        %v1057 = vld [vmem:[#allocation3 + $0x38] sm:$0xff]
        %vm1058 = vcmask 64512
        %v1059 = vsel %vm1058, %v914, -inf
        %1060 = vmax.xlane.f32.xlu0 %v1059
        %v1061 = vpop.xlane.xlu0 %1060
        %v1062 = vsel %vm1058, %v933, -inf
        %1063 = vmax.xlane.f32.xlu0 %v1062
        %v1064 = vpop.xlane.xlu0 %1063
        %v1065 = vsel %vm1058, %v952, -inf
        %1066 = vmax.xlane.f32.xlu0 %v1065
        %v1067 = vpop.xlane.xlu0 %1066
        %v1068 = vsel %vm1058, %v971, -inf
        %1069 = vmax.xlane.f32.xlu0 %v1068
        %v1070 = vpop.xlane.xlu0 %1069
        %v1071 = vsel %vm1058, %v990, -inf
        %1072 = vmax.xlane.f32.xlu0 %v1071
        %v1073 = vpop.xlane.xlu0 %1072
        %v1074 = vsel %vm1058, %v1009, -inf
        %1075 = vmax.xlane.f32.xlu0 %v1074
        %v1076 = vpop.xlane.xlu0 %1075
        %v1077 = vsel %vm1058, %v1028, -inf
        %1078 = vmax.xlane.f32.xlu0 %v1077
        %v1079 = vpop.xlane.xlu0 %1078
        %v1080 = vsel %vm1058, %v1047, -inf
        %1081 = vmax.xlane.f32.xlu0 %v1080
        %v1082 = vpop.xlane.xlu0 %1081
        %v1083 = vmax.f32 %v1050, %v1061
        %v1084 = vmax.f32 %v1051, %v1064
        %v1085 = vmax.f32 %v1052, %v1067
        %v1086 = vmax.f32 %v1053, %v1070
        %v1087 = vmax.f32 %v1054, %v1073
        %v1088 = vmax.f32 %v1055, %v1076
        %v1089 = vmax.f32 %v1056, %v1079
        %v1090 = vmax.f32 %v1057, %v1082
        %v1091 = vsub.f32 %v1050, %v1083
        %v1092 = vsub.f32 %v1051, %v1084
        %v1093 = vsub.f32 %v1052, %v1085
        %v1094 = vsub.f32 %v1053, %v1086
        %v1095 = vsub.f32 %v1054, %v1087
        %v1096 = vsub.f32 %v1055, %v1088
        %v1097 = vsub.f32 %v1056, %v1089
        %v1098 = vsub.f32 %v1057, %v1090
        %v1099 = vmul.f32 %v1091, 1.442695
        %v1100 = vpow.pop %v1099
        %v1101 = vmul.f32 %v1092, 1.442695
        %v1102 = vpow.pop %v1101
        %v1103 = vmul.f32 %v1093, 1.442695
        %v1104 = vpow.pop %v1103
        %v1105 = vmul.f32 %v1094, 1.442695
        %v1106 = vpow.pop %v1105
        %v1107 = vmul.f32 %v1095, 1.442695
        %v1108 = vpow.pop %v1107
        %v1109 = vmul.f32 %v1096, 1.442695
        %v1110 = vpow.pop %v1109
        %v1111 = vmul.f32 %v1097, 1.442695
        %v1112 = vpow.pop %v1111
        %v1113 = vmul.f32 %v1098, 1.442695
        %v1114 = vpow.pop %v1113
        %1116 = vset.pattern.permute.xlu0 0
        %1117 = vperm.xlu0 %1116, %v1083
        %v1118 = vpop.permute.xlu0 %1117
        %1121 = vset.pattern.permute.xlu0 0
        %1122 = vperm.xlu0 %1121, %v1084
        %v1123 = vpop.permute.xlu0 %1122
        %1126 = vset.pattern.permute.xlu0 0
        %1127 = vperm.xlu0 %1126, %v1085
        %v1128 = vpop.permute.xlu0 %1127
        %1131 = vset.pattern.permute.xlu0 0
        %1132 = vperm.xlu0 %1131, %v1086
        %v1133 = vpop.permute.xlu0 %1132
        %1136 = vset.pattern.permute.xlu0 0
        %1137 = vperm.xlu0 %1136, %v1087
        %v1138 = vpop.permute.xlu0 %1137
        %1141 = vset.pattern.permute.xlu0 0
        %1142 = vperm.xlu0 %1141, %v1088
        %v1143 = vpop.permute.xlu0 %1142
        %1146 = vset.pattern.permute.xlu0 0
        %1147 = vperm.xlu0 %1146, %v1089
        %v1148 = vpop.permute.xlu0 %1147
        %1151 = vset.pattern.permute.xlu0 0
        %1152 = vperm.xlu0 %1151, %v1090
        %v1153 = vpop.permute.xlu0 %1152
        %v1155 = vsub.f32 %v914, %v1118
        %v1156 = vsub.f32 %v933, %v1123
        %v1157 = vsub.f32 %v952, %v1128
        %v1158 = vsub.f32 %v971, %v1133
        %v1159 = vsub.f32 %v990, %v1138
        %v1160 = vsub.f32 %v1009, %v1143
        %v1161 = vsub.f32 %v1028, %v1148
        %v1162 = vsub.f32 %v1047, %v1153
        %v1163 = vmul.f32 %v1155, 1.442695
        %v1164 = vpow.pop %v1163
        %v1165 = vmul.f32 %v1156, 1.442695
        %v1166 = vpow.pop %v1165
        %v1167 = vmul.f32 %v1157, 1.442695
        %v1168 = vpow.pop %v1167
        %v1169 = vmul.f32 %v1158, 1.442695
        %v1170 = vpow.pop %v1169
        %v1171 = vmul.f32 %v1159, 1.442695
        %v1172 = vpow.pop %v1171
        %v1173 = vmul.f32 %v1160, 1.442695
        %v1174 = vpow.pop %v1173
        %v1175 = vmul.f32 %v1161, 1.442695
        %v1176 = vpow.pop %v1175
        %v1177 = vmul.f32 %v1162, 1.442695
        %v1178 = vpow.pop %v1177
        %v1179 = vld [vmem:[#allocation4] sm:$0xff]
        %v1180 = vld [vmem:[#allocation4 + $0x8] sm:$0xff]
        %v1181 = vld [vmem:[#allocation4 + $0x10] sm:$0xff]
        %v1182 = vld [vmem:[#allocation4 + $0x18] sm:$0xff]
        %v1183 = vld [vmem:[#allocation4 + $0x20] sm:$0xff]
        %v1184 = vld [vmem:[#allocation4 + $0x28] sm:$0xff]
        %v1185 = vld [vmem:[#allocation4 + $0x30] sm:$0xff]
        %v1186 = vld [vmem:[#allocation4 + $0x38] sm:$0xff]
        %v1187 = vmul.f32 %v1100, %v1179
        %v1188 = vmul.f32 %v1102, %v1180
        %v1189 = vmul.f32 %v1104, %v1181
        %v1190 = vmul.f32 %v1106, %v1182
        %v1191 = vmul.f32 %v1108, %v1183
        %v1192 = vmul.f32 %v1110, %v1184
        %v1193 = vmul.f32 %v1112, %v1185
        %v1194 = vmul.f32 %v1114, %v1186
        %v1195 = vsel %vm1058, %v1164, 0.0
        %1196 = vadd.xlane.f32.xlu0 %v1195
        %v1197 = vpop.xlane.xlu0 %1196
        %v1198 = vsel %vm1058, %v1166, 0.0
        %1199 = vadd.xlane.f32.xlu0 %v1198
        %v1200 = vpop.xlane.xlu0 %1199
        %v1201 = vsel %vm1058, %v1168, 0.0
        %1202 = vadd.xlane.f32.xlu0 %v1201
        %v1203 = vpop.xlane.xlu0 %1202
        %v1204 = vsel %vm1058, %v1170, 0.0
        %1205 = vadd.xlane.f32.xlu0 %v1204
        %v1206 = vpop.xlane.xlu0 %1205
        %v1207 = vsel %vm1058, %v1172, 0.0
        %1208 = vadd.xlane.f32.xlu0 %v1207
        %v1209 = vpop.xlane.xlu0 %1208
        %v1210 = vsel %vm1058, %v1174, 0.0
        %1211 = vadd.xlane.f32.xlu0 %v1210
        %v1212 = vpop.xlane.xlu0 %1211
        %v1213 = vsel %vm1058, %v1176, 0.0
        %1214 = vadd.xlane.f32.xlu0 %v1213
        %v1215 = vpop.xlane.xlu0 %1214
        %v1216 = vsel %vm1058, %v1178, 0.0
        %1217 = vadd.xlane.f32.xlu0 %v1216
        %v1218 = vpop.xlane.xlu0 %1217
        %v1219 = vadd.f32 %v1187, %v1197
        %v1220 = vadd.f32 %v1188, %v1200
        %v1221 = vadd.f32 %v1189, %v1203
        %v1222 = vadd.f32 %v1190, %v1206
        %v1223 = vadd.f32 %v1191, %v1209
        %v1224 = vadd.f32 %v1192, %v1212
        %v1225 = vadd.f32 %v1193, %v1215
        %v1226 = vadd.f32 %v1194, %v1218
        %vm1227 = vcmask 7168
        %1228 = vst.msk [vmem:[#allocation4] sm:$0xff] %vm1227, %v1219
        %1229 = vst.msk [vmem:[#allocation4 + $0x8] sm:$0xff] %vm1227, %v1220
        %1230 = vst.msk [vmem:[#allocation4 + $0x10] sm:$0xff] %vm1227, %v1221
        %1231 = vst.msk [vmem:[#allocation4 + $0x18] sm:$0xff] %vm1227, %v1222
        %1232 = vst.msk [vmem:[#allocation4 + $0x20] sm:$0xff] %vm1227, %v1223
        %1233 = vst.msk [vmem:[#allocation4 + $0x28] sm:$0xff] %vm1227, %v1224
        %1234 = vst.msk [vmem:[#allocation4 + $0x30] sm:$0xff] %vm1227, %v1225
        %1235 = vst.msk [vmem:[#allocation4 + $0x38] sm:$0xff] %vm1227, %v1226
        %v1236 = vld [vmem:[#allocation5] sm:$0xff]
        %v1237 = vld [vmem:[#allocation5 + $0x8] sm:$0xff]
        %v1238 = vld [vmem:[#allocation5 + $0x10] sm:$0xff]
        %v1239 = vld [vmem:[#allocation5 + $0x18] sm:$0xff]
        %v1240 = vld [vmem:[#allocation5 + $0x20] sm:$0xff]
        %v1241 = vld [vmem:[#allocation5 + $0x28] sm:$0xff]
        %v1242 = vld [vmem:[#allocation5 + $0x30] sm:$0xff]
        %v1243 = vld [vmem:[#allocation5 + $0x38] sm:$0xff]
        %1245 = vset.pattern.permute.xlu0 0
        %1246 = vperm.xlu0 %1245, %v1100
        %v1247 = vpop.permute.xlu0 %1246
        %1250 = vset.pattern.permute.xlu0 0
        %1251 = vperm.xlu0 %1250, %v1102
        %v1252 = vpop.permute.xlu0 %1251
        %1255 = vset.pattern.permute.xlu0 0
        %1256 = vperm.xlu0 %1255, %v1104
        %v1257 = vpop.permute.xlu0 %1256
        %1260 = vset.pattern.permute.xlu0 0
        %1261 = vperm.xlu0 %1260, %v1106
        %v1262 = vpop.permute.xlu0 %1261
        %1265 = vset.pattern.permute.xlu0 0
        %1266 = vperm.xlu0 %1265, %v1108
        %v1267 = vpop.permute.xlu0 %1266
        %1270 = vset.pattern.permute.xlu0 0
        %1271 = vperm.xlu0 %1270, %v1110
        %v1272 = vpop.permute.xlu0 %1271
        %1275 = vset.pattern.permute.xlu0 0
        %1276 = vperm.xlu0 %1275, %v1112
        %v1277 = vpop.permute.xlu0 %1276
        %1280 = vset.pattern.permute.xlu0 0
        %1281 = vperm.xlu0 %1280, %v1114
        %v1282 = vpop.permute.xlu0 %1281
        %v1284 = vmul.f32 %v1247, %v1236
        %v1285 = vmul.f32 %v1252, %v1237
        %v1286 = vmul.f32 %v1257, %v1238
        %v1287 = vmul.f32 %v1262, %v1239
        %v1288 = vmul.f32 %v1267, %v1240
        %v1289 = vmul.f32 %v1272, %v1241
        %v1290 = vmul.f32 %v1277, %v1242
        %v1291 = vmul.f32 %v1282, %v1243
        %v1292 = vpack.c.bf16 %v1164, %v1164
        %v1293 = vpack.c.bf16 %v1166, %v1166
        %v1294 = vpack.c.bf16 %v1168, %v1168
        %v1295 = vpack.c.bf16 %v1170, %v1170
        %v1296 = vpack.c.bf16 %v1172, %v1172
        %v1297 = vpack.c.bf16 %v1174, %v1174
        %v1298 = vpack.c.bf16 %v1176, %v1176
        %v1299 = vpack.c.bf16 %v1178, %v1178
        %v1301 = vsel %vm1058, %v1292, 0
        %vm1303 = vcmask 1043456
        %v1305 = vsel %vm1303, %v850, 0
        %1307 = vmatpush.bf16.msra.mxu0 0
        %1308 = vmatpush.bf16.msra.mxu0 0
        %1309 = vmatpush.bf16.msra.mxu0 0
        %1310 = vmatpush.bf16.msra.mxu0 0
        %1311 = vmatpush.bf16.msra.mxu0 0
        %1312 = vmatpush.bf16.msra.mxu0 0
        %1313 = vmatpush.bf16.msra.mxu0 0
        %1314 = vmatpush.bf16.msra.mxu0 %v1305
        %1315 = vmatmul.bf16.gmra.mxu0 %v1301
        %v1316 = vpop.f32.mrf.mxu0
        %v1317 = vadd.f32 0.0, %v1316
        %v1318 = vpop.f32.mrf.mxu0
        %1319 = vdwg.mxu0
        %v1321 = vsel %vm1058, %v1293, 0
        %v1324 = vsel %vm1303, %v884, 0
        %1326 = vmatpush.bf16.msra.mxu0 0
        %1327 = vmatpush.bf16.msra.mxu0 0
        %1328 = vmatpush.bf16.msra.mxu0 0
        %1329 = vmatpush.bf16.msra.mxu0 0
        %1330 = vmatpush.bf16.msra.mxu0 0
        %1331 = vmatpush.bf16.msra.mxu0 0
        %1332 = vmatpush.bf16.msra.mxu0 0
        %1333 = vmatpush.bf16.msra.mxu0 %v1324
        %1334 = vmatmul.bf16.gmra.mxu0 %v1321
        %v1335 = vpop.f32.mrf.mxu0
        %v1336 = vadd.f32 0.0, %v1335
        %v1337 = vpop.f32.mrf.mxu0
        %1338 = vdwg.mxu0
        %v1340 = vsel %vm1058, %v1294, 0
        %v1343 = vsel %vm1303, %v886, 0
        %1345 = vmatpush.bf16.msra.mxu0 0
        %1346 = vmatpush.bf16.msra.mxu0 0
        %1347 = vmatpush.bf16.msra.mxu0 0
        %1348 = vmatpush.bf16.msra.mxu0 0
        %1349 = vmatpush.bf16.msra.mxu0 0
        %1350 = vmatpush.bf16.msra.mxu0 0
        %1351 = vmatpush.bf16.msra.mxu0 0
        %1352 = vmatpush.bf16.msra.mxu0 %v1343
        %1353 = vmatmul.bf16.gmra.mxu0 %v1340
        %v1354 = vpop.f32.mrf.mxu0
        %v1355 = vadd.f32 0.0, %v1354
        %v1356 = vpop.f32.mrf.mxu0
        %1357 = vdwg.mxu0
        %v1359 = vsel %vm1058, %v1295, 0
        %v1362 = vsel %vm1303, %v888, 0
        %1364 = vmatpush.bf16.msra.mxu0 0
        %1365 = vmatpush.bf16.msra.mxu0 0
        %1366 = vmatpush.bf16.msra.mxu0 0
        %1367 = vmatpush.bf16.msra.mxu0 0
        %1368 = vmatpush.bf16.msra.mxu0 0
        %1369 = vmatpush.bf16.msra.mxu0 0
        %1370 = vmatpush.bf16.msra.mxu0 0
        %1371 = vmatpush.bf16.msra.mxu0 %v1362
        %1372 = vmatmul.bf16.gmra.mxu0 %v1359
        %v1373 = vpop.f32.mrf.mxu0
        %v1374 = vadd.f32 0.0, %v1373
        %v1375 = vpop.f32.mrf.mxu0
        %1376 = vdwg.mxu0
        %v1378 = vsel %vm1058, %v1296, 0
        %v1381 = vsel %vm1303, %v890, 0
        %1383 = vmatpush.bf16.msra.mxu0 0
        %1384 = vmatpush.bf16.msra.mxu0 0
        %1385 = vmatpush.bf16.msra.mxu0 0
        %1386 = vmatpush.bf16.msra.mxu0 0
        %1387 = vmatpush.bf16.msra.mxu0 0
        %1388 = vmatpush.bf16.msra.mxu0 0
        %1389 = vmatpush.bf16.msra.mxu0 0
        %1390 = vmatpush.bf16.msra.mxu0 %v1381
        %1391 = vmatmul.bf16.gmra.mxu0 %v1378
        %v1392 = vpop.f32.mrf.mxu0
        %v1393 = vadd.f32 0.0, %v1392
        %v1394 = vpop.f32.mrf.mxu0
        %1395 = vdwg.mxu0
        %v1397 = vsel %vm1058, %v1297, 0
        %v1400 = vsel %vm1303, %v892, 0
        %1402 = vmatpush.bf16.msra.mxu0 0
        %1403 = vmatpush.bf16.msra.mxu0 0
        %1404 = vmatpush.bf16.msra.mxu0 0
        %1405 = vmatpush.bf16.msra.mxu0 0
        %1406 = vmatpush.bf16.msra.mxu0 0
        %1407 = vmatpush.bf16.msra.mxu0 0
        %1408 = vmatpush.bf16.msra.mxu0 0
        %1409 = vmatpush.bf16.msra.mxu0 %v1400
        %1410 = vmatmul.bf16.gmra.mxu0 %v1397
        %v1411 = vpop.f32.mrf.mxu0
        %v1412 = vadd.f32 0.0, %v1411
        %v1413 = vpop.f32.mrf.mxu0
        %1414 = vdwg.mxu0
        %v1416 = vsel %vm1058, %v1298, 0
        %v1419 = vsel %vm1303, %v894, 0
        %1421 = vmatpush.bf16.msra.mxu0 0
        %1422 = vmatpush.bf16.msra.mxu0 0
        %1423 = vmatpush.bf16.msra.mxu0 0
        %1424 = vmatpush.bf16.msra.mxu0 0
        %1425 = vmatpush.bf16.msra.mxu0 0
        %1426 = vmatpush.bf16.msra.mxu0 0
        %1427 = vmatpush.bf16.msra.mxu0 0
        %1428 = vmatpush.bf16.msra.mxu0 %v1419
        %1429 = vmatmul.bf16.gmra.mxu0 %v1416
        %v1430 = vpop.f32.mrf.mxu0
        %v1431 = vadd.f32 0.0, %v1430
        %v1432 = vpop.f32.mrf.mxu0
        %1433 = vdwg.mxu0
        %v1435 = vsel %vm1058, %v1299, 0
        %v1438 = vsel %vm1303, %v896, 0
        %1440 = vmatpush.bf16.msra.mxu0 0
        %1441 = vmatpush.bf16.msra.mxu0 0
        %1442 = vmatpush.bf16.msra.mxu0 0
        %1443 = vmatpush.bf16.msra.mxu0 0
        %1444 = vmatpush.bf16.msra.mxu0 0
        %1445 = vmatpush.bf16.msra.mxu0 0
        %1446 = vmatpush.bf16.msra.mxu0 0
        %1447 = vmatpush.bf16.msra.mxu0 %v1438
        %1448 = vmatmul.bf16.gmra.mxu0 %v1435
        %v1449 = vpop.f32.mrf.mxu0
        %v1450 = vadd.f32 0.0, %v1449
        %v1451 = vpop.f32.mrf.mxu0
        %1452 = vdwg.mxu0
        %v1453 = vadd.f32 %v1284, %v1317
        %v1454 = vadd.f32 %v1285, %v1336
        %v1455 = vadd.f32 %v1286, %v1355
        %v1456 = vadd.f32 %v1287, %v1374
        %v1457 = vadd.f32 %v1288, %v1393
        %v1458 = vadd.f32 %v1289, %v1412
        %v1459 = vadd.f32 %v1290, %v1431
        %v1460 = vadd.f32 %v1291, %v1450
        %1461 = vst.msk [vmem:[#allocation5] sm:$0xff] %vm897, %v1453
        %1462 = vst.msk [vmem:[#allocation5 + $0x8] sm:$0xff] %vm897, %v1454
        %1463 = vst.msk [vmem:[#allocation5 + $0x10] sm:$0xff] %vm897, %v1455
        %1464 = vst.msk [vmem:[#allocation5 + $0x18] sm:$0xff] %vm897, %v1456
        %1465 = vst.msk [vmem:[#allocation5 + $0x20] sm:$0xff] %vm897, %v1457
        %1466 = vst.msk [vmem:[#allocation5 + $0x28] sm:$0xff] %vm897, %v1458
        %1467 = vst.msk [vmem:[#allocation5 + $0x30] sm:$0xff] %vm897, %v1459
        %1468 = vst.msk [vmem:[#allocation5 + $0x38] sm:$0xff] %vm897, %v1460
        %1469 = vst.msk [vmem:[#allocation3] sm:$0xff] %vm1227, %v1083
        %1470 = vst.msk [vmem:[#allocation3 + $0x8] sm:$0xff] %vm1227, %v1084
        %1471 = vst.msk [vmem:[#allocation3 + $0x10] sm:$0xff] %vm1227, %v1085
        %1472 = vst.msk [vmem:[#allocation3 + $0x18] sm:$0xff] %vm1227, %v1086
        %1473 = vst.msk [vmem:[#allocation3 + $0x20] sm:$0xff] %vm1227, %v1087
        %1474 = vst.msk [vmem:[#allocation3 + $0x28] sm:$0xff] %vm1227, %v1088
        %1475 = vst.msk [vmem:[#allocation3 + $0x30] sm:$0xff] %vm1227, %v1089
        %1476 = vst.msk [vmem:[#allocation3 + $0x38] sm:$0xff] %vm1227, %v1090
        // Predicated region
        $region105: #{attention_forward.1} parent=67 // pred_check
          %p1477 = pneg %p593
        $region106: #{attention_forward.1} parent=67 // pred_check_branch
          %1479 = sbr.rel (%p1477) target = $region108
        $region107: #{attention_forward.1} parent=67 // pred_region
          %v1480 = vld [vmem:[#allocation5] sm:$0xff]
          %v1481 = vld [vmem:[#allocation5 + $0x8] sm:$0xff]
          %v1482 = vld [vmem:[#allocation5 + $0x10] sm:$0xff]
          %v1483 = vld [vmem:[#allocation5 + $0x18] sm:$0xff]
          %v1484 = vld [vmem:[#allocation5 + $0x20] sm:$0xff]
          %v1485 = vld [vmem:[#allocation5 + $0x28] sm:$0xff]
          %v1486 = vld [vmem:[#allocation5 + $0x30] sm:$0xff]
          %v1487 = vld [vmem:[#allocation5 + $0x38] sm:$0xff]
          %v1488 = vld [vmem:[#allocation4] sm:$0xff]
          %v1489 = vld [vmem:[#allocation4 + $0x8] sm:$0xff]
          %v1490 = vld [vmem:[#allocation4 + $0x10] sm:$0xff]
          %v1491 = vld [vmem:[#allocation4 + $0x18] sm:$0xff]
          %v1492 = vld [vmem:[#allocation4 + $0x20] sm:$0xff]
          %v1493 = vld [vmem:[#allocation4 + $0x28] sm:$0xff]
          %v1494 = vld [vmem:[#allocation4 + $0x30] sm:$0xff]
          %v1495 = vld [vmem:[#allocation4 + $0x38] sm:$0xff]
          %v1496 = vrcp.pop %v1488
          %v1497 = vrcp.pop %v1489
          %v1498 = vrcp.pop %v1490
          %v1499 = vrcp.pop %v1491
          %v1500 = vrcp.pop %v1492
          %v1501 = vrcp.pop %v1493
          %v1502 = vrcp.pop %v1494
          %v1503 = vrcp.pop %v1495
          %1505 = vset.pattern.permute.xlu0 0
          %1506 = vperm.xlu0 %1505, %v1496
          %v1507 = vpop.permute.xlu0 %1506
          %1510 = vset.pattern.permute.xlu0 0
          %1511 = vperm.xlu0 %1510, %v1497
          %v1512 = vpop.permute.xlu0 %1511
          %1515 = vset.pattern.permute.xlu0 0
          %1516 = vperm.xlu0 %1515, %v1498
          %v1517 = vpop.permute.xlu0 %1516
          %1520 = vset.pattern.permute.xlu0 0
          %1521 = vperm.xlu0 %1520, %v1499
          %v1522 = vpop.permute.xlu0 %1521
          %1525 = vset.pattern.permute.xlu0 0
          %1526 = vperm.xlu0 %1525, %v1500
          %v1527 = vpop.permute.xlu0 %1526
          %1530 = vset.pattern.permute.xlu0 0
          %1531 = vperm.xlu0 %1530, %v1501
          %v1532 = vpop.permute.xlu0 %1531
          %1535 = vset.pattern.permute.xlu0 0
          %1536 = vperm.xlu0 %1535, %v1502
          %v1537 = vpop.permute.xlu0 %1536
          %1540 = vset.pattern.permute.xlu0 0
          %1541 = vperm.xlu0 %1540, %v1503
          %v1542 = vpop.permute.xlu0 %1541
          %v1544 = vmul.f32 %v1480, %v1507
          %v1545 = vmul.f32 %v1481, %v1512
          %v1546 = vmul.f32 %v1482, %v1517
          %v1547 = vmul.f32 %v1483, %v1522
          %v1548 = vmul.f32 %v1484, %v1527
          %v1549 = vmul.f32 %v1485, %v1532
          %v1550 = vmul.f32 %v1486, %v1537
          %v1551 = vmul.f32 %v1487, %v1542
          %1553 = vrot.lane.b32.xlu0 %v1545, 16
          %v1554 = vpop.permute.xlu0 %1553
          %1557 = vrot.lane.b32.xlu0 %v1546, 32
          %v1558 = vpop.permute.xlu0 %1557
          %1561 = vrot.lane.b32.xlu0 %v1547, 48
          %v1562 = vpop.permute.xlu0 %1561
          %1565 = vrot.lane.b32.xlu0 %v1548, 64
          %v1566 = vpop.permute.xlu0 %1565
          %1569 = vrot.lane.b32.xlu0 %v1549, 80
          %v1570 = vpop.permute.xlu0 %1569
          %1573 = vrot.lane.b32.xlu0 %v1550, 96
          %v1574 = vpop.permute.xlu0 %1573
          %1577 = vrot.lane.b32.xlu0 %v1551, 112
          %v1578 = vpop.permute.xlu0 %1577
          %v1580 = vsel %vm897, %v1544, %v1554
          %vm1581 = vcmask 261120
          %v1582 = vsel %vm1581, %v1580, %v1558
          %vm1583 = vcmask 392192
          %v1584 = vsel %vm1583, %v1582, %v1562
          %v1585 = vsel %vm783, %v1584, %v1566
          %vm1586 = vcmask 654336
          %v1587 = vsel %vm1586, %v1585, %v1570
          %vm1588 = vcmask 785408
          %v1589 = vsel %vm1588, %v1587, %v1574
          %vm1590 = vcmask 916480
          %v1591 = vsel %vm1590, %v1589, %v1578
          %v1592 = vpack.c.bf16 %v1591, %v1591
          %v1593 = vld [vmem:[#allocation15] sm:$0xf]
          %v1594 = vld [vmem:[#allocation15 + $0x4] sm:$0xf]
          %v1595 = vld [vmem:[#allocation15 + $0x8] sm:$0xf]
          %v1596 = vld [vmem:[#allocation15 + $0xc] sm:$0xf]
          %v1597 = vld [vmem:[#allocation15 + $0x10] sm:$0xf]
          %v1598 = vld [vmem:[#allocation15 + $0x14] sm:$0xf]
          %v1599 = vld [vmem:[#allocation15 + $0x18] sm:$0xf]
          %v1600 = vld [vmem:[#allocation15 + $0x1c] sm:$0xf]
          %v1601 = vld [vmem:[#allocation15 + $0x20] sm:$0xf]
          %v1602 = vld [vmem:[#allocation15 + $0x24] sm:$0xf]
          %v1603 = vld [vmem:[#allocation15 + $0x28] sm:$0xf]
          %v1604 = vld [vmem:[#allocation15 + $0x2c] sm:$0xf]
          %v1605 = vld [vmem:[#allocation15 + $0x30] sm:$0xf]
          %v1606 = vld [vmem:[#allocation15 + $0x34] sm:$0xf]
          %v1607 = vld [vmem:[#allocation15 + $0x38] sm:$0xf]
          %v1608 = vld [vmem:[#allocation15 + $0x3c] sm:$0xf]
          %v1609 = vld [vmem:[#allocation17] sm:$0x1]
          %v1611 = vperm.slane %v1609, 0
          %v1629 = vunpack.c.l.b16 %v1593
          %v1630 = vunpack.c.l.b16 %v1594
          %v1631 = vunpack.c.l.b16 %v1595
          %v1632 = vunpack.c.l.b16 %v1596
          %v1633 = vunpack.c.l.b16 %v1597
          %v1634 = vunpack.c.l.b16 %v1598
          %v1635 = vunpack.c.l.b16 %v1599
          %v1636 = vunpack.c.l.b16 %v1600
          %v1637 = vunpack.c.l.b16 %v1601
          %v1638 = vunpack.c.l.b16 %v1602
          %v1639 = vunpack.c.l.b16 %v1603
          %v1640 = vunpack.c.l.b16 %v1604
          %v1641 = vunpack.c.l.b16 %v1605
          %v1642 = vunpack.c.l.b16 %v1606
          %v1643 = vunpack.c.l.b16 %v1607
          %v1644 = vunpack.c.l.b16 %v1608
          %v1645 = vpack.c.b16 %v1630, %v1629
          %v1646 = vpack.c.b16 %v1632, %v1631
          %v1647 = vpack.c.b16 %v1634, %v1633
          %v1648 = vpack.c.b16 %v1636, %v1635
          %v1649 = vpack.c.b16 %v1638, %v1637
          %v1650 = vpack.c.b16 %v1640, %v1639
          %v1651 = vpack.c.b16 %v1642, %v1641
          %v1652 = vpack.c.b16 %v1644, %v1643
          %1661 = vmatpush.bf16.msra.mxu0 %v1652
          %1662 = vmatpush.bf16.msra.mxu0 %v1651
          %1663 = vmatpush.bf16.msra.mxu0 %v1650
          %1664 = vmatpush.bf16.msra.mxu0 %v1649
          %1665 = vmatpush.bf16.msra.mxu0 %v1648
          %1666 = vmatpush.bf16.msra.mxu0 %v1647
          %1667 = vmatpush.bf16.msra.mxu0 %v1646
          %1668 = vmatpush.bf16.msra.mxu0 %v1645
          %1669 = vmatmul.bf16.gmra.mxu0 %v1592
          %v1670 = vpop.f32.mrf.mxu0
          %v1671 = vadd.f32 %v1611, %v1670
          %v1672 = vpop.f32.mrf.mxu0
          %1673 = vdwg.mxu0
          %v1674 = vld [vmem:[%s505] sm:$0xff]
          %v1675 = vadd.f32 %v1674, %v1671
          %1676 = vst [vmem:[%s591] sm:$0xff] %v1675
        $region108: #{attention_forward.1} parent=67 // pred_fallthru
          _
        %s1677 = sand.u32 %s330, 1
        %s1678 = scalar_lea.sflag [#allocation8], %s1677
        %s1679 = sand.u32 %s330, 1
        %s1680 = smul.addr %s1679, 8
        %s1681 = scalar_lea.vmem [#allocation20], %s1680
        // Predicated region
        $region109: #{attention_forward.1} parent=67 // pred_check
          %p1682 = pneg %p340
        $region110: #{attention_forward.1} parent=67 // pred_check_branch
          %1684 = sbr.rel (%p1682) target = $region112
        $region111: #{attention_forward.1} parent=67 // pred_region
          %1686 = vsyncadd %s1678, 0
          %s1687 = sadd.s32 %s41, %s40
          %s1688 = smul.addr %s1687, 8
          %s1689 = scalar_lea.hbm %s12, %s1688
          %s1691 = sshll.u32 %s1681, 4
          %s1692 = int_to_ptr.vmem [resolvable:$true] %s1691
          %s1693 = sshll.u32 %s1689, 4
          %s1694 = int_to_ptr.hbm [resolvable:$true] %s1693
          %1696 = dma.vmem_to_hbm [thread:$0]  %s1692, 128, %s1694, %s1678
        $region112: #{attention_forward.1} parent=67 // pred_fallthru
          _
      $region68: #{attention_forward.1} parent=5 // pred_fallthru
        _
      %p1697 = scmp.le.s32.totalorder 2, %s30
      // Predicated region
      $region113: #{attention_forward.1} parent=5 // pred_check
        %p1698 = pneg %p1697
      $region114: #{attention_forward.1} parent=5 // pred_check_branch
        %1700 = sbr.rel (%p1698) target = $region116
      $region115: #{attention_forward.1} parent=5 // pred_region
        %s1701 = ssub.s32 %s30, 2
        // Predicated region
        $region117: #{attention_forward.1} parent=115 // pred_check
          %p1702 = pneg %p346
        $region118: #{attention_forward.1} parent=115 // pred_check_branch
          %1704 = sbr.rel (%p1702) target = $region120
        $region119: #{attention_forward.1} parent=115 // pred_region
          %s1705 = sand.u32 %s331, 1
          %s1706 = scalar_lea.sflag [#allocation8], %s1705
          %s1707 = sand.u32 %s331, 1
          %s1708 = smul.addr %s1707, 8
          %s1709 = scalar_lea.vmem [#allocation20], %s1708
          %1711 = dma.done %s1706, 128
        $region120: #{attention_forward.1} parent=115 // pred_fallthru
          _
      $region116: #{attention_forward.1} parent=5 // pred_fallthru
        _
    $region6: #{attention_forward.1} parent=1 // loop_footer
      %s34 = sadd.s32 1, %s30
    $region7: #{attention_forward.1} parent=1 // loop_footer_branch
      %29 = sbr.rel target = $region3
    $region8: #{attention_forward.1} parent=1 // loop_exit
      _
    %1712 = vsyncpa [#allocation7], 1
    %s1713 = scalar_lea.sflag [#allocation7], 1
    %1714 = vsyncpa %s1713, 1
    %1715 = vsyncpa [#allocation10], 1
    %s1716 = scalar_lea.sflag [#allocation10], 1
    %1717 = vsyncpa %s1716, 1
    %1718 = vsyncpa [#allocation13], 1
    %1719 = vsyncpa [#allocation16], 1
    %1720 = vsyncpa [#allocation19], 1
    %1721 = vsyncpa [#allocation8], 1
    %s1722 = scalar_lea.sflag [#allocation8], 1
    %1723 = vsyncpa %s1722, 1

</llo_original>
